<compile_context>
chip_gen: v5e
topology: v5e:2x2
jax: 0.10.0
libtpu: 0.0.40
codegen_flags: <defaults>
</compile_context>

<pallas_src>
import jax
import jax.numpy as jnp
from jax import lax
from jax.experimental import pallas as pl
from jax.experimental.pallas import tpu as pltpu


# ---------------------------------------------------------------------------
# Model configuration (small, deterministic)
# ---------------------------------------------------------------------------
B, C, L = 2, 4, 16                # batch, input channels, sequence length
K = 3                             # conv kernel size (padding=1 -> same length)
CONV_FEATURES = {"conv_a": 8, "conv_b": 8}
F_TOTAL = sum(CONV_FEATURES.values())                       # 16
CONV_OUTPUT_GROUPS = {"rec1": ["conv_a", "conv_b"], "rec2": ["conv_b"]}
REC_HIDDEN = {"rec1": 16, "rec2": 8}
H1, H2 = REC_HIDDEN["rec1"], REC_HIDDEN["rec2"]
H_SUM = H1 + H2                                             # 24
D1 = F_TOTAL                                                # rec1 input width
D2 = CONV_FEATURES["conv_b"]                                # rec2 input width
HIDDEN_LAYERS = [32]                                        # single LinearBlock
N_OUT = HIDDEN_LAYERS[0]                                    # 32
N_PAD = 128                                                 # lane-dense output width
G = 128                                                     # gate-group lane stride

# Row layout of the packed f32 weight slab (width 3*G = 384).  All slab reads
# are one-time prologue loads.
ROW_WC = 0                        # rows [0, 12)  : conv im2col weight (3C, F)
ROW_BC = ROW_WC + K * C           # row  12       : conv bias          (1, F)
ROW_WIH = 16                      # rows [16, 32) : dual-GRU W_ih      (F, 3G)
ROW_BX = 32                       # row  32       : hoisted gate bias  (1, 3G)
ROW_BHN = 33                      # row  33       : b_hh of n gate     (1, H_SUM)
ROW_BF = 34                       # row  34       : FFNN bias          (1, N_PAD)
ROW_WF = 40                       # rows [40, 64) : FFNN weight        (H_SUM, N_PAD)
SLAB_ROWS = ROW_WF + H_SUM        # 64


# ---------------------------------------------------------------------------
# Fused Pallas kernel: Conv1d+ReLU -> dual GRU -> LinearBlock, all in VMEM
# ---------------------------------------------------------------------------
def _fused_forward_kernel(x_ref, w_ref, whh_ref, o_ref, hs_ref):
    f32 = jnp.float32

    # -- Conv1d(C, F_TOTAL, k=3, pad=1) + ReLU as ONE im2col matmul.
    xcol = x_ref[...]                                          # (L*B, 3C)
    wc = w_ref[ROW_WC:ROW_WC + K * C, 0:F_TOTAL]               # (3C, F)
    bc = w_ref[ROW_BC:ROW_BC + 1, 0:F_TOTAL]                   # (1, F)
    conv = jnp.maximum(
        jnp.dot(xcol, wc, preferred_element_type=f32) + bc, 0.0)   # (L*B, F)

    # -- Hoisted GRU input projections for BOTH rec models in one matmul.
    #    Columns are gate groups on a 128-lane stride: [r|pad][z|pad][n|pad];
    #    inside each group, lanes [0:H1]=rec1, [H1:H_SUM]=rec2.  b_ih (all
    #    gates) and b_hh (r, z) are pre-folded into bx.
    wih = w_ref[ROW_WIH:ROW_WIH + F_TOTAL, :]                  # (F, 3G)
    bx = w_ref[ROW_BX:ROW_BX + 1, :]                           # (1, 3G)
    gx = jnp.dot(conv, wih, preferred_element_type=f32) + bx   # (L*B, 3G)

    bhn = w_ref[ROW_BHN:ROW_BHN + 1, 0:H_SUM]                  # (1, H_SUM)
    whh = whh_ref[...]                                         # (H_SUM, 3G) bf16

    # -- rec1 + rec2 as ONE block-diagonal recurrence over packed h = [h1|h2].
    #    PyTorch GRU semantics (r,z,n gate order; b_hh_n inside the r*(.)
    #    term).  Every gate slice below starts at a 128-lane vreg boundary, so
    #    there are no cross-lane rotates on the serial chain.  The per-step
    #    matmul runs with bf16 MXU operands (single pass); gate elementwise
    #    math stays f32 (v5e has no bf16 VPU/EUP).  L is static -> unrolled.
    h = jnp.zeros((B, H_SUM), f32)
    for t in range(L):
        gxt = gx[t * B:(t + 1) * B, :]                         # (B, 3G) static slice
        hh = jnp.dot(h.astype(jnp.bfloat16), whh,
                     preferred_element_type=f32)               # (B, 3G)
        r = jax.nn.sigmoid(gxt[:, 0:H_SUM] + hh[:, 0:H_SUM])
        z = jax.nn.sigmoid(gxt[:, G:G + H_SUM] + hh[:, G:G + H_SUM])
        n = jnp.tanh(gxt[:, 2 * G:2 * G + H_SUM]
                     + r * (hh[:, 2 * G:2 * G + H_SUM] + bhn))
        h = (1.0 - z) * n + z * h
        hs_ref[t * B:(t + 1) * B, :] = h                       # off-chain VMEM stash

    # -- FFNN LinearBlock (Linear + ReLU, dropout p=0), hoisted out of the
    #    loop: one (L*B, H_SUM) @ (H_SUM, N_PAD) matmul and a single fully
    #    lane/sublane-dense (32, 128) store.
    hs = hs_ref[...]                                           # (L*B, H_SUM)
    wf = w_ref[ROW_WF:ROW_WF + H_SUM, 0:N_PAD]                 # (H_SUM, N_PAD)
    bf = w_ref[ROW_BF:ROW_BF + 1, 0:N_PAD]                     # (1, N_PAD)
    y = jnp.dot(hs, wf, preferred_element_type=f32) + bf
    o_ref[...] = jnp.maximum(y, 0.0)


def fused_forward(xcol, slab, whh):
    return pl.pallas_call(
        _fused_forward_kernel,
        out_shape=jax.ShapeDtypeStruct((L * B, N_PAD), jnp.float32),
        grid=(1,),
        in_specs=[
            pl.BlockSpec((L * B, K * C), lambda i: (0, 0)),
            pl.BlockSpec((SLAB_ROWS, 3 * G), lambda i: (0, 0)),
            pl.BlockSpec((H_SUM, 3 * G), lambda i: (0, 0)),
        ],
        out_specs=pl.BlockSpec((L * B, N_PAD), lambda i: (0, 0)),
        scratch_shapes=[pltpu.VMEM((L * B, H_SUM), jnp.float32)],
        compiler_params=pltpu.CompilerParams(dimension_semantics=("arbitrary",)),
    )(xcol, slab, whh)


@jax.jit
def forward(x, slab, whh):
    """x: (B, C, L) torch-style input -> (B, L, N_OUT)."""
    # Layout-only prologue: time-major rows (row = t*B + b) plus the k=3/pad=1
    # im2col columns [x[t-1] | x[t] | x[t+1]].  Pure layout plumbing on ~2 KB;
    # XLA fuses it with the transpose into one input fusion (no FLOPs moved
    # out of the kernel).
    xt = jnp.transpose(x, (2, 0, 1))                           # (L, B, C)
    xz = jnp.zeros((1, B, C), x.dtype)
    xpad = jnp.concatenate([xz, xt, xz], axis=0)               # (L+2, B, C)
    xcol = jnp.concatenate([xpad[0:L], xpad[1:L + 1], xpad[2:L + 2]], axis=-1)
    out = fused_forward(xcol.reshape(L * B, K * C), slab, whh)  # (L*B, N_PAD)
    return jnp.transpose(out.reshape(L, B, N_PAD), (1, 0, 2))[..., :N_OUT]


# ---------------------------------------------------------------------------
# Parameter init (canonical PyTorch layouts) and packing for the fused kernel
# ---------------------------------------------------------------------------
def init_params(key):
    ks = jax.random.split(key, 6)
    params = {
        # Conv1d weight in PyTorch layout (F, C, K), bias (F,)
        "conv_w": jax.random.normal(ks[0], (F_TOTAL, C, K), jnp.float32)
                  / jnp.sqrt(C * K),
        "conv_b": 0.01 * jax.random.normal(ks[1], (F_TOTAL,), jnp.float32),
        # FFNN LinearBlock(H_SUM, N_OUT) in PyTorch layout (N_OUT, H_SUM), (N_OUT,)
        "ffnn_w": jax.random.normal(ks[2], (N_OUT, H_SUM), jnp.float32)
                  / jnp.sqrt(H_SUM),
        "ffnn_b": 0.01 * jax.random.normal(ks[3], (N_OUT,), jnp.float32),
    }
    rec_dims = {"rec1": (D1, H1), "rec2": (D2, H2)}
    for i, (name, (d, h)) in enumerate(rec_dims.items()):
        ka, kb, kc, kd = jax.random.split(ks[4 + i], 4)
        # PyTorch GRU layouts: weight_ih (3H, D), weight_hh (3H, H), biases (3H,)
        params[name] = {
            "w_ih": jax.random.normal(ka, (3 * h, d), jnp.float32) / jnp.sqrt(d),
            "w_hh": jax.random.normal(kb, (3 * h, h), jnp.float32) / jnp.sqrt(h),
            "b_ih": 0.01 * jax.random.normal(kc, (3 * h,), jnp.float32),
            "b_hh": 0.01 * jax.random.normal(kd, (3 * h,), jnp.float32),
        }
    return params


def pack_params(p):
    """Pack canonical (PyTorch-layout) params into the 2 fused-kernel operands."""
    f32 = jnp.float32

    # Conv taps: torch (F, C, K) -> (3C, F), rows ordered [k=0 | k=1 | k=2],
    # matching the wrapper im2col column order [x[t-1] | x[t] | x[t+1]].
    wc = jnp.transpose(p["conv_w"], (2, 1, 0)).reshape(K * C, F_TOTAL)

    # Dual-GRU weights, block-diagonal, gate groups on a 128-lane stride.
    wih = jnp.zeros((F_TOTAL, 3 * G), f32)
    whh = jnp.zeros((H_SUM, 3 * G), f32)
    bx = jnp.zeros((3 * G,), f32)
    bhn = jnp.zeros((H_SUM,), f32)
    # (hidden, hidden offset, conv-feature rows this rec model consumes)
    layouts = {"rec1": (H1, 0, 0, F_TOTAL),
               "rec2": (H2, H1, CONV_FEATURES["conv_a"], F_TOTAL)}
    for name, (h, ho, r0, r1) in layouts.items():
        q = p[name]
        for g in range(3):                        # 0=r, 1=z, 2=n (PyTorch order)
            col = g * G + ho
            wih = wih.at[r0:r1, col:col + h].set(q["w_ih"][g * h:(g + 1) * h, :].T)
            whh = whh.at[ho:ho + h, col:col + h].set(q["w_hh"][g * h:(g + 1) * h, :].T)
            bi = q["b_ih"][g * h:(g + 1) * h]
            bh = q["b_hh"][g * h:(g + 1) * h]
            if g < 2:                             # fold b_hh into hoisted bias
                bx = bx.at[col:col + h].set(bi + bh)
            else:                                 # b_hh_n stays inside r*(...)
                bx = bx.at[col:col + h].set(bi)
                bhn = bhn.at[ho:ho + h].set(bh)

    # Single f32 weight slab (everything except the recurrence weight).
    slab = jnp.zeros((SLAB_ROWS, 3 * G), f32)
    slab = slab.at[ROW_WC:ROW_WC + K * C, :F_TOTAL].set(wc)
    slab = slab.at[ROW_BC, :F_TOTAL].set(p["conv_b"])
    slab = slab.at[ROW_WIH:ROW_WIH + F_TOTAL, :].set(wih)
    slab = slab.at[ROW_BX, :].set(bx)
    slab = slab.at[ROW_BHN, :H_SUM].set(bhn)
    slab = slab.at[ROW_BF, :N_OUT].set(p["ffnn_b"])
    slab = slab.at[ROW_WF:ROW_WF + H_SUM, :N_OUT].set(p["ffnn_w"].T)

    # Recurrence weight ships as bf16 -> single-pass MXU on the serial chain.
    return slab, whh.astype(jnp.bfloat16)


# ---------------------------------------------------------------------------
# Pure-JAX reference (mirrors the PyTorch module) for a correctness check
# ---------------------------------------------------------------------------
def _conv1d_relu_ref(x, w, b):
    xp = jnp.pad(x, ((0, 0), (0, 0), (1, 1)))
    out = b[None, :, None]
    for k in range(K):
        out = out + jnp.einsum("bcl,fc->bfl", xp[:, :, k:k + L], w[:, :, k],
                               precision=lax.Precision.HIGHEST)
    return jax.nn.relu(out)                                    # (B, F, L)


def _gru_ref(xin, q):
    w_ih, w_hh, b_ih, b_hh = q["w_ih"], q["w_hh"], q["b_ih"], q["b_hh"]

    def cell(h, x_t):
        gi = jnp.dot(x_t, w_ih.T, precision=lax.Precision.HIGHEST) + b_ih
        gh = jnp.dot(h, w_hh.T, precision=lax.Precision.HIGHEST) + b_hh
        i_r, i_z, i_n = jnp.split(gi, 3, axis=-1)
        h_r, h_z, h_n = jnp.split(gh, 3, axis=-1)
        r = jax.nn.sigmoid(i_r + h_r)
        z = jax.nn.sigmoid(i_z + h_z)
        n = jnp.tanh(i_n + r * h_n)
        h_new = (1.0 - z) * n + z * h
        return h_new, h_new

    h0 = jnp.zeros((xin.shape[0], w_hh.shape[1]), jnp.float32)
    _, hs = lax.scan(cell, h0, jnp.swapaxes(xin, 0, 1))
    return jnp.swapaxes(hs, 0, 1)                              # (B, L, H)


def reference_forward(x, params):
    conv = _conv1d_relu_ref(x, params["conv_w"], params["conv_b"])
    conv = jnp.transpose(conv, (0, 2, 1))                      # (B, L, F_TOTAL)
    fa = CONV_FEATURES["conv_a"]
    feats = {"conv_a": conv[..., :fa], "conv_b": conv[..., fa:]}
    outs = []
    for name in ("rec1", "rec2"):
        xin = jnp.concatenate([feats[k] for k in CONV_OUTPUT_GROUPS[name]], -1)
        outs.append(_gru_ref(xin, params[name]))
    out = jnp.concatenate(outs, axis=-1)                       # (B, L, H_SUM)
    out = jnp.dot(out, params["ffnn_w"].T, precision=lax.Precision.HIGHEST)
    return jax.nn.relu(out + params["ffnn_b"])                 # (B, L, N_OUT)


# ---------------------------------------------------------------------------
if __name__ == "__main__":
    key = jax.random.PRNGKey(0)
    kx, kp = jax.random.split(key)
    x = jax.random.normal(kx, (B, C, L), jnp.float32)
    params = init_params(kp)
    slab, whh = pack_params(params)

    y = forward(x, slab, whh)
    y = jax.block_until_ready(y)
    assert y.shape == (B, L, N_OUT), y.shape
    assert bool(jnp.all(jnp.isfinite(y)))

    y_ref = jax.block_until_ready(jax.jit(reference_forward)(x, params))
    # Kernel uses bf16 MXU operands on the recurrent chain (per perf review);
    # reference is pure f32 HIGHEST -> slightly looser tolerance than pure f32.
    assert bool(jnp.allclose(y, y_ref, rtol=3e-2, atol=3e-2)), \
        float(jnp.max(jnp.abs(y - y_ref)))

    print("KERNEL_OK")
</pallas_src>

<mosaic_0001>
module attributes {stable_mosaic.version = 11 : i64} {
  func.func @_fused_forward_kernel(%arg0: i32, %arg1: memref<32x12xf32, #tpu.memory_space<vmem>>, %arg2: memref<64x384xf32, #tpu.memory_space<vmem>>, %arg3: memref<24x384xbf16, #tpu.memory_space<vmem>>, %arg4: memref<32x128xf32, #tpu.memory_space<vmem>>, %arg5: memref<32x24xf32, #tpu.memory_space<vmem>>) attributes {dimension_semantics = [#tpu.dimension_semantics<arbitrary>], iteration_bounds = array<i64: 1>, scalar_prefetch = 0 : i64, scratch_operands = 1 : i64, tpu.core_type = #tpu.core_type<tc>, window_params = [{pipeline_mode = #tpu.pipeline_mode<synchronous>, transform_indices = @transform_0, window_bounds = array<i64: 32, 12>}, {pipeline_mode = #tpu.pipeline_mode<synchronous>, transform_indices = @transform_1, window_bounds = array<i64: 64, 384>}, {pipeline_mode = #tpu.pipeline_mode<synchronous>, transform_indices = @transform_2, window_bounds = array<i64: 24, 384>}, {pipeline_mode = #tpu.pipeline_mode<synchronous>, transform_indices = @transform_3, window_bounds = array<i64: 32, 128>}]} {
    %c0 = arith.constant 0 : index
    %c0_0 = arith.constant 0 : index
    %0 = vector.load %arg1[%c0, %c0_0] : memref<32x12xf32, #tpu.memory_space<vmem>>, vector<32x12xf32>
    %c0_1 = arith.constant 0 : index
    %c0_2 = arith.constant 0 : index
    %1 = vector.load %arg2[%c0_1, %c0_2] : memref<64x384xf32, #tpu.memory_space<vmem>>, vector<12x16xf32>
    %c12 = arith.constant 12 : index
    %c0_3 = arith.constant 0 : index
    %2 = vector.load %arg2[%c12, %c0_3] : memref<64x384xf32, #tpu.memory_space<vmem>>, vector<1x16xf32>
    %cst = arith.constant dense<0.000000e+00> : vector<32x16xf32>
    %3 = tpu.matmul %0, %1, %cst {dimension_numbers = #tpu.dot_dimension_numbers<[1], [0], [0], [1], [0, 0, 1, 1], [], []>} : vector<32x12xf32>, vector<12x16xf32>, vector<32x16xf32> -> vector<32x16xf32>
    %4 = vector.broadcast %2 : vector<1x16xf32> to vector<32x16xf32>
    %5 = arith.addf %3, %4 : vector<32x16xf32>
    %cst_4 = arith.constant 0.000000e+00 : f32
    %6 = vector.broadcast %cst_4 : f32 to vector<32x16xf32>
    %7 = arith.maximumf %5, %6 : vector<32x16xf32>
    %c16 = arith.constant 16 : index
    %c0_5 = arith.constant 0 : index
    %8 = vector.load %arg2[%c16, %c0_5] : memref<64x384xf32, #tpu.memory_space<vmem>>, vector<16x384xf32>
    %c32 = arith.constant 32 : index
    %c0_6 = arith.constant 0 : index
    %9 = vector.load %arg2[%c32, %c0_6] : memref<64x384xf32, #tpu.memory_space<vmem>>, vector<1x384xf32>
    %cst_7 = arith.constant dense<0.000000e+00> : vector<32x384xf32>
    %10 = tpu.matmul %7, %8, %cst_7 {dimension_numbers = #tpu.dot_dimension_numbers<[1], [0], [0], [1], [0, 0, 1, 1], [], []>} : vector<32x16xf32>, vector<16x384xf32>, vector<32x384xf32> -> vector<32x384xf32>
    %11 = vector.broadcast %9 : vector<1x384xf32> to vector<32x384xf32>
    %12 = arith.addf %10, %11 : vector<32x384xf32>
    %c33 = arith.constant 33 : index
    %c0_8 = arith.constant 0 : index
    %13 = vector.load %arg2[%c33, %c0_8] : memref<64x384xf32, #tpu.memory_space<vmem>>, vector<1x24xf32>
    %c0_9 = arith.constant 0 : index
    %c0_10 = arith.constant 0 : index
    %14 = vector.load %arg3[%c0_9, %c0_10] : memref<24x384xbf16, #tpu.memory_space<vmem>>, vector<24x384xbf16>
    %cst_11 = arith.constant 0.000000e+00 : f32
    %15 = vector.broadcast %cst_11 : f32 to vector<2x24xf32>
    %16 = vector.extract_strided_slice %12 {offsets = [0, 0], sizes = [2, 384], strides = [1, 1]} : vector<32x384xf32> to vector<2x384xf32>
    %17 = arith.truncf %15 : vector<2x24xf32> to vector<2x24xbf16>
    %cst_12 = arith.constant dense<0.000000e+00> : vector<2x384xf32>
    %18 = tpu.matmul %17, %14, %cst_12 {dimension_numbers = #tpu.dot_dimension_numbers<[1], [0], [0], [1], [0, 0, 1, 1], [], []>} : vector<2x24xbf16>, vector<24x384xbf16>, vector<2x384xf32> -> vector<2x384xf32>
    %19 = vector.extract_strided_slice %16 {offsets = [0, 0], sizes = [2, 24], strides = [1, 1]} : vector<2x384xf32> to vector<2x24xf32>
    %20 = vector.extract_strided_slice %18 {offsets = [0, 0], sizes = [2, 24], strides = [1, 1]} : vector<2x384xf32> to vector<2x24xf32>
    %21 = arith.addf %19, %20 : vector<2x24xf32>
    %22 = arith.negf %21 : vector<2x24xf32>
    %23 = math.exp %22 : vector<2x24xf32>
    %cst_13 = arith.constant 1.000000e+00 : f32
    %24 = vector.broadcast %cst_13 : f32 to vector<2x24xf32>
    %25 = arith.addf %24, %23 : vector<2x24xf32>
    %26 = arith.divf %24, %25 : vector<2x24xf32>
    %27 = vector.extract_strided_slice %16 {offsets = [0, 128], sizes = [2, 24], strides = [1, 1]} : vector<2x384xf32> to vector<2x24xf32>
    %28 = vector.extract_strided_slice %18 {offsets = [0, 128], sizes = [2, 24], strides = [1, 1]} : vector<2x384xf32> to vector<2x24xf32>
    %29 = arith.addf %27, %28 : vector<2x24xf32>
    %30 = arith.negf %29 : vector<2x24xf32>
    %31 = math.exp %30 : vector<2x24xf32>
    %cst_14 = arith.constant 1.000000e+00 : f32
    %32 = vector.broadcast %cst_14 : f32 to vector<2x24xf32>
    %33 = arith.addf %32, %31 : vector<2x24xf32>
    %34 = arith.divf %32, %33 : vector<2x24xf32>
    %35 = vector.extract_strided_slice %16 {offsets = [0, 256], sizes = [2, 24], strides = [1, 1]} : vector<2x384xf32> to vector<2x24xf32>
    %36 = vector.extract_strided_slice %18 {offsets = [0, 256], sizes = [2, 24], strides = [1, 1]} : vector<2x384xf32> to vector<2x24xf32>
    %37 = vector.broadcast %13 : vector<1x24xf32> to vector<2x24xf32>
    %38 = arith.addf %36, %37 : vector<2x24xf32>
    %39 = arith.mulf %26, %38 : vector<2x24xf32>
    %40 = arith.addf %35, %39 : vector<2x24xf32>
    %41 = math.tanh %40 : vector<2x24xf32>
    %cst_15 = arith.constant 1.000000e+00 : f32
    %42 = vector.broadcast %cst_15 : f32 to vector<2x24xf32>
    %43 = arith.subf %42, %34 : vector<2x24xf32>
    %44 = arith.mulf %43, %41 : vector<2x24xf32>
    %45 = arith.mulf %34, %15 : vector<2x24xf32>
    %46 = arith.addf %44, %45 : vector<2x24xf32>
    %c0_16 = arith.constant 0 : index
    %c0_17 = arith.constant 0 : index
    %47 = vector.load %arg5[%c0_16, %c0_17] : memref<32x24xf32, #tpu.memory_space<vmem>>, vector<2x24xf32>
    tpu.vector_store %arg5[%c0_16, %c0_17], %46 {strides = array<i32>} : memref<32x24xf32, #tpu.memory_space<vmem>>, vector<2x24xf32>,
    %48 = vector.extract_strided_slice %12 {offsets = [2, 0], sizes = [2, 384], strides = [1, 1]} : vector<32x384xf32> to vector<2x384xf32>
    %49 = arith.truncf %46 : vector<2x24xf32> to vector<2x24xbf16>
    %cst_18 = arith.constant dense<0.000000e+00> : vector<2x384xf32>
    %50 = tpu.matmul %49, %14, %cst_18 {dimension_numbers = #tpu.dot_dimension_numbers<[1], [0], [0], [1], [0, 0, 1, 1], [], []>} : vector<2x24xbf16>, vector<24x384xbf16>, vector<2x384xf32> -> vector<2x384xf32>
    %51 = vector.extract_strided_slice %48 {offsets = [0, 0], sizes = [2, 24], strides = [1, 1]} : vector<2x384xf32> to vector<2x24xf32>
    %52 = vector.extract_strided_slice %50 {offsets = [0, 0], sizes = [2, 24], strides = [1, 1]} : vector<2x384xf32> to vector<2x24xf32>
    %53 = arith.addf %51, %52 : vector<2x24xf32>
    %54 = arith.negf %53 : vector<2x24xf32>
    %55 = math.exp %54 : vector<2x24xf32>
    %cst_19 = arith.constant 1.000000e+00 : f32
    %56 = vector.broadcast %cst_19 : f32 to vector<2x24xf32>
    %57 = arith.addf %56, %55 : vector<2x24xf32>
    %58 = arith.divf %56, %57 : vector<2x24xf32>
    %59 = vector.extract_strided_slice %48 {offsets = [0, 128], sizes = [2, 24], strides = [1, 1]} : vector<2x384xf32> to vector<2x24xf32>
    %60 = vector.extract_strided_slice %50 {offsets = [0, 128], sizes = [2, 24], strides = [1, 1]} : vector<2x384xf32> to vector<2x24xf32>
    %61 = arith.addf %59, %60 : vector<2x24xf32>
    %62 = arith.negf %61 : vector<2x24xf32>
    %63 = math.exp %62 : vector<2x24xf32>
    %cst_20 = arith.constant 1.000000e+00 : f32
    %64 = vector.broadcast %cst_20 : f32 to vector<2x24xf32>
    %65 = arith.addf %64, %63 : vector<2x24xf32>
    %66 = arith.divf %64, %65 : vector<2x24xf32>
    %67 = vector.extract_strided_slice %48 {offsets = [0, 256], sizes = [2, 24], strides = [1, 1]} : vector<2x384xf32> to vector<2x24xf32>
    %68 = vector.extract_strided_slice %50 {offsets = [0, 256], sizes = [2, 24], strides = [1, 1]} : vector<2x384xf32> to vector<2x24xf32>
    %69 = vector.broadcast %13 : vector<1x24xf32> to vector<2x24xf32>
    %70 = arith.addf %68, %69 : vector<2x24xf32>
    %71 = arith.mulf %58, %70 : vector<2x24xf32>
    %72 = arith.addf %67, %71 : vector<2x24xf32>
    %73 = math.tanh %72 : vector<2x24xf32>
    %cst_21 = arith.constant 1.000000e+00 : f32
    %74 = vector.broadcast %cst_21 : f32 to vector<2x24xf32>
    %75 = arith.subf %74, %66 : vector<2x24xf32>
    %76 = arith.mulf %75, %73 : vector<2x24xf32>
    %77 = arith.mulf %66, %46 : vector<2x24xf32>
    %78 = arith.addf %76, %77 : vector<2x24xf32>
    %c2 = arith.constant 2 : index
    %c0_22 = arith.constant 0 : index
    %79 = vector.load %arg5[%c2, %c0_22] : memref<32x24xf32, #tpu.memory_space<vmem>>, vector<2x24xf32>
    tpu.vector_store %arg5[%c2, %c0_22], %78 {strides = array<i32>} : memref<32x24xf32, #tpu.memory_space<vmem>>, vector<2x24xf32>,
    %80 = vector.extract_strided_slice %12 {offsets = [4, 0], sizes = [2, 384], strides = [1, 1]} : vector<32x384xf32> to vector<2x384xf32>
    %81 = arith.truncf %78 : vector<2x24xf32> to vector<2x24xbf16>
    %cst_23 = arith.constant dense<0.000000e+00> : vector<2x384xf32>
    %82 = tpu.matmul %81, %14, %cst_23 {dimension_numbers = #tpu.dot_dimension_numbers<[1], [0], [0], [1], [0, 0, 1, 1], [], []>} : vector<2x24xbf16>, vector<24x384xbf16>, vector<2x384xf32> -> vector<2x384xf32>
    %83 = vector.extract_strided_slice %80 {offsets = [0, 0], sizes = [2, 24], strides = [1, 1]} : vector<2x384xf32> to vector<2x24xf32>
    %84 = vector.extract_strided_slice %82 {offsets = [0, 0], sizes = [2, 24], strides = [1, 1]} : vector<2x384xf32> to vector<2x24xf32>
    %85 = arith.addf %83, %84 : vector<2x24xf32>
    %86 = arith.negf %85 : vector<2x24xf32>
    %87 = math.exp %86 : vector<2x24xf32>
    %cst_24 = arith.constant 1.000000e+00 : f32
    %88 = vector.broadcast %cst_24 : f32 to vector<2x24xf32>
    %89 = arith.addf %88, %87 : vector<2x24xf32>
    %90 = arith.divf %88, %89 : vector<2x24xf32>
    %91 = vector.extract_strided_slice %80 {offsets = [0, 128], sizes = [2, 24], strides = [1, 1]} : vector<2x384xf32> to vector<2x24xf32>
    %92 = vector.extract_strided_slice %82 {offsets = [0, 128], sizes = [2, 24], strides = [1, 1]} : vector<2x384xf32> to vector<2x24xf32>
    %93 = arith.addf %91, %92 : vector<2x24xf32>
    %94 = arith.negf %93 : vector<2x24xf32>
    %95 = math.exp %94 : vector<2x24xf32>
    %cst_25 = arith.constant 1.000000e+00 : f32
    %96 = vector.broadcast %cst_25 : f32 to vector<2x24xf32>
    %97 = arith.addf %96, %95 : vector<2x24xf32>
    %98 = arith.divf %96, %97 : vector<2x24xf32>
    %99 = vector.extract_strided_slice %80 {offsets = [0, 256], sizes = [2, 24], strides = [1, 1]} : vector<2x384xf32> to vector<2x24xf32>
    %100 = vector.extract_strided_slice %82 {offsets = [0, 256], sizes = [2, 24], strides = [1, 1]} : vector<2x384xf32> to vector<2x24xf32>
    %101 = vector.broadcast %13 : vector<1x24xf32> to vector<2x24xf32>
    %102 = arith.addf %100, %101 : vector<2x24xf32>
    %103 = arith.mulf %90, %102 : vector<2x24xf32>
    %104 = arith.addf %99, %103 : vector<2x24xf32>
    %105 = math.tanh %104 : vector<2x24xf32>
    %cst_26 = arith.constant 1.000000e+00 : f32
    %106 = vector.broadcast %cst_26 : f32 to vector<2x24xf32>
    %107 = arith.subf %106, %98 : vector<2x24xf32>
    %108 = arith.mulf %107, %105 : vector<2x24xf32>
    %109 = arith.mulf %98, %78 : vector<2x24xf32>
    %110 = arith.addf %108, %109 : vector<2x24xf32>
    %c4 = arith.constant 4 : index
    %c0_27 = arith.constant 0 : index
    %111 = vector.load %arg5[%c4, %c0_27] : memref<32x24xf32, #tpu.memory_space<vmem>>, vector<2x24xf32>
    tpu.vector_store %arg5[%c4, %c0_27], %110 {strides = array<i32>} : memref<32x24xf32, #tpu.memory_space<vmem>>, vector<2x24xf32>,
    %112 = vector.extract_strided_slice %12 {offsets = [6, 0], sizes = [2, 384], strides = [1, 1]} : vector<32x384xf32> to vector<2x384xf32>
    %113 = arith.truncf %110 : vector<2x24xf32> to vector<2x24xbf16>
    %cst_28 = arith.constant dense<0.000000e+00> : vector<2x384xf32>
    %114 = tpu.matmul %113, %14, %cst_28 {dimension_numbers = #tpu.dot_dimension_numbers<[1], [0], [0], [1], [0, 0, 1, 1], [], []>} : vector<2x24xbf16>, vector<24x384xbf16>, vector<2x384xf32> -> vector<2x384xf32>
    %115 = vector.extract_strided_slice %112 {offsets = [0, 0], sizes = [2, 24], strides = [1, 1]} : vector<2x384xf32> to vector<2x24xf32>
    %116 = vector.extract_strided_slice %114 {offsets = [0, 0], sizes = [2, 24], strides = [1, 1]} : vector<2x384xf32> to vector<2x24xf32>
    %117 = arith.addf %115, %116 : vector<2x24xf32>
    %118 = arith.negf %117 : vector<2x24xf32>
    %119 = math.exp %118 : vector<2x24xf32>
    %cst_29 = arith.constant 1.000000e+00 : f32
    %120 = vector.broadcast %cst_29 : f32 to vector<2x24xf32>
    %121 = arith.addf %120, %119 : vector<2x24xf32>
    %122 = arith.divf %120, %121 : vector<2x24xf32>
    %123 = vector.extract_strided_slice %112 {offsets = [0, 128], sizes = [2, 24], strides = [1, 1]} : vector<2x384xf32> to vector<2x24xf32>
    %124 = vector.extract_strided_slice %114 {offsets = [0, 128], sizes = [2, 24], strides = [1, 1]} : vector<2x384xf32> to vector<2x24xf32>
    %125 = arith.addf %123, %124 : vector<2x24xf32>
    %126 = arith.negf %125 : vector<2x24xf32>
    %127 = math.exp %126 : vector<2x24xf32>
    %cst_30 = arith.constant 1.000000e+00 : f32
    %128 = vector.broadcast %cst_30 : f32 to vector<2x24xf32>
    %129 = arith.addf %128, %127 : vector<2x24xf32>
    %130 = arith.divf %128, %129 : vector<2x24xf32>
    %131 = vector.extract_strided_slice %112 {offsets = [0, 256], sizes = [2, 24], strides = [1, 1]} : vector<2x384xf32> to vector<2x24xf32>
    %132 = vector.extract_strided_slice %114 {offsets = [0, 256], sizes = [2, 24], strides = [1, 1]} : vector<2x384xf32> to vector<2x24xf32>
    %133 = vector.broadcast %13 : vector<1x24xf32> to vector<2x24xf32>
    %134 = arith.addf %132, %133 : vector<2x24xf32>
    %135 = arith.mulf %122, %134 : vector<2x24xf32>
    %136 = arith.addf %131, %135 : vector<2x24xf32>
    %137 = math.tanh %136 : vector<2x24xf32>
    %cst_31 = arith.constant 1.000000e+00 : f32
    %138 = vector.broadcast %cst_31 : f32 to vector<2x24xf32>
    %139 = arith.subf %138, %130 : vector<2x24xf32>
    %140 = arith.mulf %139, %137 : vector<2x24xf32>
    %141 = arith.mulf %130, %110 : vector<2x24xf32>
    %142 = arith.addf %140, %141 : vector<2x24xf32>
    %c6 = arith.constant 6 : index
    %c0_32 = arith.constant 0 : index
    %143 = vector.load %arg5[%c6, %c0_32] : memref<32x24xf32, #tpu.memory_space<vmem>>, vector<2x24xf32>
    tpu.vector_store %arg5[%c6, %c0_32], %142 {strides = array<i32>} : memref<32x24xf32, #tpu.memory_space<vmem>>, vector<2x24xf32>,
    %144 = vector.extract_strided_slice %12 {offsets = [8, 0], sizes = [2, 384], strides = [1, 1]} : vector<32x384xf32> to vector<2x384xf32>
    %145 = arith.truncf %142 : vector<2x24xf32> to vector<2x24xbf16>
    %cst_33 = arith.constant dense<0.000000e+00> : vector<2x384xf32>
    %146 = tpu.matmul %145, %14, %cst_33 {dimension_numbers = #tpu.dot_dimension_numbers<[1], [0], [0], [1], [0, 0, 1, 1], [], []>} : vector<2x24xbf16>, vector<24x384xbf16>, vector<2x384xf32> -> vector<2x384xf32>
    %147 = vector.extract_strided_slice %144 {offsets = [0, 0], sizes = [2, 24], strides = [1, 1]} : vector<2x384xf32> to vector<2x24xf32>
    %148 = vector.extract_strided_slice %146 {offsets = [0, 0], sizes = [2, 24], strides = [1, 1]} : vector<2x384xf32> to vector<2x24xf32>
    %149 = arith.addf %147, %148 : vector<2x24xf32>
    %150 = arith.negf %149 : vector<2x24xf32>
    %151 = math.exp %150 : vector<2x24xf32>
    %cst_34 = arith.constant 1.000000e+00 : f32
    %152 = vector.broadcast %cst_34 : f32 to vector<2x24xf32>
    %153 = arith.addf %152, %151 : vector<2x24xf32>
    %154 = arith.divf %152, %153 : vector<2x24xf32>
    %155 = vector.extract_strided_slice %144 {offsets = [0, 128], sizes = [2, 24], strides = [1, 1]} : vector<2x384xf32> to vector<2x24xf32>
    %156 = vector.extract_strided_slice %146 {offsets = [0, 128], sizes = [2, 24], strides = [1, 1]} : vector<2x384xf32> to vector<2x24xf32>
    %157 = arith.addf %155, %156 : vector<2x24xf32>
    %158 = arith.negf %157 : vector<2x24xf32>
    %159 = math.exp %158 : vector<2x24xf32>
    %cst_35 = arith.constant 1.000000e+00 : f32
    %160 = vector.broadcast %cst_35 : f32 to vector<2x24xf32>
    %161 = arith.addf %160, %159 : vector<2x24xf32>
    %162 = arith.divf %160, %161 : vector<2x24xf32>
    %163 = vector.extract_strided_slice %144 {offsets = [0, 256], sizes = [2, 24], strides = [1, 1]} : vector<2x384xf32> to vector<2x24xf32>
    %164 = vector.extract_strided_slice %146 {offsets = [0, 256], sizes = [2, 24], strides = [1, 1]} : vector<2x384xf32> to vector<2x24xf32>
    %165 = vector.broadcast %13 : vector<1x24xf32> to vector<2x24xf32>
    %166 = arith.addf %164, %165 : vector<2x24xf32>
    %167 = arith.mulf %154, %166 : vector<2x24xf32>
    %168 = arith.addf %163, %167 : vector<2x24xf32>
    %169 = math.tanh %168 : vector<2x24xf32>
    %cst_36 = arith.constant 1.000000e+00 : f32
    %170 = vector.broadcast %cst_36 : f32 to vector<2x24xf32>
    %171 = arith.subf %170, %162 : vector<2x24xf32>
    %172 = arith.mulf %171, %169 : vector<2x24xf32>
    %173 = arith.mulf %162, %142 : vector<2x24xf32>
    %174 = arith.addf %172, %173 : vector<2x24xf32>
    %c8 = arith.constant 8 : index
    %c0_37 = arith.constant 0 : index
    %175 = vector.load %arg5[%c8, %c0_37] : memref<32x24xf32, #tpu.memory_space<vmem>>, vector<2x24xf32>
    tpu.vector_store %arg5[%c8, %c0_37], %174 {strides = array<i32>} : memref<32x24xf32, #tpu.memory_space<vmem>>, vector<2x24xf32>,
    %176 = vector.extract_strided_slice %12 {offsets = [10, 0], sizes = [2, 384], strides = [1, 1]} : vector<32x384xf32> to vector<2x384xf32>
    %177 = arith.truncf %174 : vector<2x24xf32> to vector<2x24xbf16>
    %cst_38 = arith.constant dense<0.000000e+00> : vector<2x384xf32>
    %178 = tpu.matmul %177, %14, %cst_38 {dimension_numbers = #tpu.dot_dimension_numbers<[1], [0], [0], [1], [0, 0, 1, 1], [], []>} : vector<2x24xbf16>, vector<24x384xbf16>, vector<2x384xf32> -> vector<2x384xf32>
    %179 = vector.extract_strided_slice %176 {offsets = [0, 0], sizes = [2, 24], strides = [1, 1]} : vector<2x384xf32> to vector<2x24xf32>
    %180 = vector.extract_strided_slice %178 {offsets = [0, 0], sizes = [2, 24], strides = [1, 1]} : vector<2x384xf32> to vector<2x24xf32>
    %181 = arith.addf %179, %180 : vector<2x24xf32>
    %182 = arith.negf %181 : vector<2x24xf32>
    %183 = math.exp %182 : vector<2x24xf32>
    %cst_39 = arith.constant 1.000000e+00 : f32
    %184 = vector.broadcast %cst_39 : f32 to vector<2x24xf32>
    %185 = arith.addf %184, %183 : vector<2x24xf32>
    %186 = arith.divf %184, %185 : vector<2x24xf32>
    %187 = vector.extract_strided_slice %176 {offsets = [0, 128], sizes = [2, 24], strides = [1, 1]} : vector<2x384xf32> to vector<2x24xf32>
    %188 = vector.extract_strided_slice %178 {offsets = [0, 128], sizes = [2, 24], strides = [1, 1]} : vector<2x384xf32> to vector<2x24xf32>
    %189 = arith.addf %187, %188 : vector<2x24xf32>
    %190 = arith.negf %189 : vector<2x24xf32>
    %191 = math.exp %190 : vector<2x24xf32>
    %cst_40 = arith.constant 1.000000e+00 : f32
    %192 = vector.broadcast %cst_40 : f32 to vector<2x24xf32>
    %193 = arith.addf %192, %191 : vector<2x24xf32>
    %194 = arith.divf %192, %193 : vector<2x24xf32>
    %195 = vector.extract_strided_slice %176 {offsets = [0, 256], sizes = [2, 24], strides = [1, 1]} : vector<2x384xf32> to vector<2x24xf32>
    %196 = vector.extract_strided_slice %178 {offsets = [0, 256], sizes = [2, 24], strides = [1, 1]} : vector<2x384xf32> to vector<2x24xf32>
    %197 = vector.broadcast %13 : vector<1x24xf32> to vector<2x24xf32>
    %198 = arith.addf %196, %197 : vector<2x24xf32>
    %199 = arith.mulf %186, %198 : vector<2x24xf32>
    %200 = arith.addf %195, %199 : vector<2x24xf32>
    %201 = math.tanh %200 : vector<2x24xf32>
    %cst_41 = arith.constant 1.000000e+00 : f32
    %202 = vector.broadcast %cst_41 : f32 to vector<2x24xf32>
    %203 = arith.subf %202, %194 : vector<2x24xf32>
    %204 = arith.mulf %203, %201 : vector<2x24xf32>
    %205 = arith.mulf %194, %174 : vector<2x24xf32>
    %206 = arith.addf %204, %205 : vector<2x24xf32>
    %c10 = arith.constant 10 : index
    %c0_42 = arith.constant 0 : index
    %207 = vector.load %arg5[%c10, %c0_42] : memref<32x24xf32, #tpu.memory_space<vmem>>, vector<2x24xf32>
    tpu.vector_store %arg5[%c10, %c0_42], %206 {strides = array<i32>} : memref<32x24xf32, #tpu.memory_space<vmem>>, vector<2x24xf32>,
    %208 = vector.extract_strided_slice %12 {offsets = [12, 0], sizes = [2, 384], strides = [1, 1]} : vector<32x384xf32> to vector<2x384xf32>
    %209 = arith.truncf %206 : vector<2x24xf32> to vector<2x24xbf16>
    %cst_43 = arith.constant dense<0.000000e+00> : vector<2x384xf32>
    %210 = tpu.matmul %209, %14, %cst_43 {dimension_numbers = #tpu.dot_dimension_numbers<[1], [0], [0], [1], [0, 0, 1, 1], [], []>} : vector<2x24xbf16>, vector<24x384xbf16>, vector<2x384xf32> -> vector<2x384xf32>
    %211 = vector.extract_strided_slice %208 {offsets = [0, 0], sizes = [2, 24], strides = [1, 1]} : vector<2x384xf32> to vector<2x24xf32>
    %212 = vector.extract_strided_slice %210 {offsets = [0, 0], sizes = [2, 24], strides = [1, 1]} : vector<2x384xf32> to vector<2x24xf32>
    %213 = arith.addf %211, %212 : vector<2x24xf32>
    %214 = arith.negf %213 : vector<2x24xf32>
    %215 = math.exp %214 : vector<2x24xf32>
    %cst_44 = arith.constant 1.000000e+00 : f32
    %216 = vector.broadcast %cst_44 : f32 to vector<2x24xf32>
    %217 = arith.addf %216, %215 : vector<2x24xf32>
    %218 = arith.divf %216, %217 : vector<2x24xf32>
    %219 = vector.extract_strided_slice %208 {offsets = [0, 128], sizes = [2, 24], strides = [1, 1]} : vector<2x384xf32> to vector<2x24xf32>
    %220 = vector.extract_strided_slice %210 {offsets = [0, 128], sizes = [2, 24], strides = [1, 1]} : vector<2x384xf32> to vector<2x24xf32>
    %221 = arith.addf %219, %220 : vector<2x24xf32>
    %222 = arith.negf %221 : vector<2x24xf32>
    %223 = math.exp %222 : vector<2x24xf32>
    %cst_45 = arith.constant 1.000000e+00 : f32
    %224 = vector.broadcast %cst_45 : f32 to vector<2x24xf32>
    %225 = arith.addf %224, %223 : vector<2x24xf32>
    %226 = arith.divf %224, %225 : vector<2x24xf32>
    %227 = vector.extract_strided_slice %208 {offsets = [0, 256], sizes = [2, 24], strides = [1, 1]} : vector<2x384xf32> to vector<2x24xf32>
    %228 = vector.extract_strided_slice %210 {offsets = [0, 256], sizes = [2, 24], strides = [1, 1]} : vector<2x384xf32> to vector<2x24xf32>
    %229 = vector.broadcast %13 : vector<1x24xf32> to vector<2x24xf32>
    %230 = arith.addf %228, %229 : vector<2x24xf32>
    %231 = arith.mulf %218, %230 : vector<2x24xf32>
    %232 = arith.addf %227, %231 : vector<2x24xf32>
    %233 = math.tanh %232 : vector<2x24xf32>
    %cst_46 = arith.constant 1.000000e+00 : f32
    %234 = vector.broadcast %cst_46 : f32 to vector<2x24xf32>
    %235 = arith.subf %234, %226 : vector<2x24xf32>
    %236 = arith.mulf %235, %233 : vector<2x24xf32>
    %237 = arith.mulf %226, %206 : vector<2x24xf32>
    %238 = arith.addf %236, %237 : vector<2x24xf32>
    %c12_47 = arith.constant 12 : index
    %c0_48 = arith.constant 0 : index
    %239 = vector.load %arg5[%c12_47, %c0_48] : memref<32x24xf32, #tpu.memory_space<vmem>>, vector<2x24xf32>
    tpu.vector_store %arg5[%c12_47, %c0_48], %238 {strides = array<i32>} : memref<32x24xf32, #tpu.memory_space<vmem>>, vector<2x24xf32>,
    %240 = vector.extract_strided_slice %12 {offsets = [14, 0], sizes = [2, 384], strides = [1, 1]} : vector<32x384xf32> to vector<2x384xf32>
    %241 = arith.truncf %238 : vector<2x24xf32> to vector<2x24xbf16>
    %cst_49 = arith.constant dense<0.000000e+00> : vector<2x384xf32>
    %242 = tpu.matmul %241, %14, %cst_49 {dimension_numbers = #tpu.dot_dimension_numbers<[1], [0], [0], [1], [0, 0, 1, 1], [], []>} : vector<2x24xbf16>, vector<24x384xbf16>, vector<2x384xf32> -> vector<2x384xf32>
    %243 = vector.extract_strided_slice %240 {offsets = [0, 0], sizes = [2, 24], strides = [1, 1]} : vector<2x384xf32> to vector<2x24xf32>
    %244 = vector.extract_strided_slice %242 {offsets = [0, 0], sizes = [2, 24], strides = [1, 1]} : vector<2x384xf32> to vector<2x24xf32>
    %245 = arith.addf %243, %244 : vector<2x24xf32>
    %246 = arith.negf %245 : vector<2x24xf32>
    %247 = math.exp %246 : vector<2x24xf32>
    %cst_50 = arith.constant 1.000000e+00 : f32
    %248 = vector.broadcast %cst_50 : f32 to vector<2x24xf32>
    %249 = arith.addf %248, %247 : vector<2x24xf32>
    %250 = arith.divf %248, %249 : vector<2x24xf32>
    %251 = vector.extract_strided_slice %240 {offsets = [0, 128], sizes = [2, 24], strides = [1, 1]} : vector<2x384xf32> to vector<2x24xf32>
    %252 = vector.extract_strided_slice %242 {offsets = [0, 128], sizes = [2, 24], strides = [1, 1]} : vector<2x384xf32> to vector<2x24xf32>
    %253 = arith.addf %251, %252 : vector<2x24xf32>
    %254 = arith.negf %253 : vector<2x24xf32>
    %255 = math.exp %254 : vector<2x24xf32>
    %cst_51 = arith.constant 1.000000e+00 : f32
    %256 = vector.broadcast %cst_51 : f32 to vector<2x24xf32>
    %257 = arith.addf %256, %255 : vector<2x24xf32>
    %258 = arith.divf %256, %257 : vector<2x24xf32>
    %259 = vector.extract_strided_slice %240 {offsets = [0, 256], sizes = [2, 24], strides = [1, 1]} : vector<2x384xf32> to vector<2x24xf32>
    %260 = vector.extract_strided_slice %242 {offsets = [0, 256], sizes = [2, 24], strides = [1, 1]} : vector<2x384xf32> to vector<2x24xf32>
    %261 = vector.broadcast %13 : vector<1x24xf32> to vector<2x24xf32>
    %262 = arith.addf %260, %261 : vector<2x24xf32>
    %263 = arith.mulf %250, %262 : vector<2x24xf32>
    %264 = arith.addf %259, %263 : vector<2x24xf32>
    %265 = math.tanh %264 : vector<2x24xf32>
    %cst_52 = arith.constant 1.000000e+00 : f32
    %266 = vector.broadcast %cst_52 : f32 to vector<2x24xf32>
    %267 = arith.subf %266, %258 : vector<2x24xf32>
    %268 = arith.mulf %267, %265 : vector<2x24xf32>
    %269 = arith.mulf %258, %238 : vector<2x24xf32>
    %270 = arith.addf %268, %269 : vector<2x24xf32>
    %c14 = arith.constant 14 : index
    %c0_53 = arith.constant 0 : index
    %271 = vector.load %arg5[%c14, %c0_53] : memref<32x24xf32, #tpu.memory_space<vmem>>, vector<2x24xf32>
    tpu.vector_store %arg5[%c14, %c0_53], %270 {strides = array<i32>} : memref<32x24xf32, #tpu.memory_space<vmem>>, vector<2x24xf32>,
    %272 = vector.extract_strided_slice %12 {offsets = [16, 0], sizes = [2, 384], strides = [1, 1]} : vector<32x384xf32> to vector<2x384xf32>
    %273 = arith.truncf %270 : vector<2x24xf32> to vector<2x24xbf16>
    %cst_54 = arith.constant dense<0.000000e+00> : vector<2x384xf32>
    %274 = tpu.matmul %273, %14, %cst_54 {dimension_numbers = #tpu.dot_dimension_numbers<[1], [0], [0], [1], [0, 0, 1, 1], [], []>} : vector<2x24xbf16>, vector<24x384xbf16>, vector<2x384xf32> -> vector<2x384xf32>
    %275 = vector.extract_strided_slice %272 {offsets = [0, 0], sizes = [2, 24], strides = [1, 1]} : vector<2x384xf32> to vector<2x24xf32>
    %276 = vector.extract_strided_slice %274 {offsets = [0, 0], sizes = [2, 24], strides = [1, 1]} : vector<2x384xf32> to vector<2x24xf32>
    %277 = arith.addf %275, %276 : vector<2x24xf32>
    %278 = arith.negf %277 : vector<2x24xf32>
    %279 = math.exp %278 : vector<2x24xf32>
    %cst_55 = arith.constant 1.000000e+00 : f32
    %280 = vector.broadcast %cst_55 : f32 to vector<2x24xf32>
    %281 = arith.addf %280, %279 : vector<2x24xf32>
    %282 = arith.divf %280, %281 : vector<2x24xf32>
    %283 = vector.extract_strided_slice %272 {offsets = [0, 128], sizes = [2, 24], strides = [1, 1]} : vector<2x384xf32> to vector<2x24xf32>
    %284 = vector.extract_strided_slice %274 {offsets = [0, 128], sizes = [2, 24], strides = [1, 1]} : vector<2x384xf32> to vector<2x24xf32>
    %285 = arith.addf %283, %284 : vector<2x24xf32>
    %286 = arith.negf %285 : vector<2x24xf32>
    %287 = math.exp %286 : vector<2x24xf32>
    %cst_56 = arith.constant 1.000000e+00 : f32
    %288 = vector.broadcast %cst_56 : f32 to vector<2x24xf32>
    %289 = arith.addf %288, %287 : vector<2x24xf32>
    %290 = arith.divf %288, %289 : vector<2x24xf32>
    %291 = vector.extract_strided_slice %272 {offsets = [0, 256], sizes = [2, 24], strides = [1, 1]} : vector<2x384xf32> to vector<2x24xf32>
    %292 = vector.extract_strided_slice %274 {offsets = [0, 256], sizes = [2, 24], strides = [1, 1]} : vector<2x384xf32> to vector<2x24xf32>
    %293 = vector.broadcast %13 : vector<1x24xf32> to vector<2x24xf32>
    %294 = arith.addf %292, %293 : vector<2x24xf32>
    %295 = arith.mulf %282, %294 : vector<2x24xf32>
    %296 = arith.addf %291, %295 : vector<2x24xf32>
    %297 = math.tanh %296 : vector<2x24xf32>
    %cst_57 = arith.constant 1.000000e+00 : f32
    %298 = vector.broadcast %cst_57 : f32 to vector<2x24xf32>
    %299 = arith.subf %298, %290 : vector<2x24xf32>
    %300 = arith.mulf %299, %297 : vector<2x24xf32>
    %301 = arith.mulf %290, %270 : vector<2x24xf32>
    %302 = arith.addf %300, %301 : vector<2x24xf32>
    %c16_58 = arith.constant 16 : index
    %c0_59 = arith.constant 0 : index
    %303 = vector.load %arg5[%c16_58, %c0_59] : memref<32x24xf32, #tpu.memory_space<vmem>>, vector<2x24xf32>
    tpu.vector_store %arg5[%c16_58, %c0_59], %302 {strides = array<i32>} : memref<32x24xf32, #tpu.memory_space<vmem>>, vector<2x24xf32>,
    %304 = vector.extract_strided_slice %12 {offsets = [18, 0], sizes = [2, 384], strides = [1, 1]} : vector<32x384xf32> to vector<2x384xf32>
    %305 = arith.truncf %302 : vector<2x24xf32> to vector<2x24xbf16>
    %cst_60 = arith.constant dense<0.000000e+00> : vector<2x384xf32>
    %306 = tpu.matmul %305, %14, %cst_60 {dimension_numbers = #tpu.dot_dimension_numbers<[1], [0], [0], [1], [0, 0, 1, 1], [], []>} : vector<2x24xbf16>, vector<24x384xbf16>, vector<2x384xf32> -> vector<2x384xf32>
    %307 = vector.extract_strided_slice %304 {offsets = [0, 0], sizes = [2, 24], strides = [1, 1]} : vector<2x384xf32> to vector<2x24xf32>
    %308 = vector.extract_strided_slice %306 {offsets = [0, 0], sizes = [2, 24], strides = [1, 1]} : vector<2x384xf32> to vector<2x24xf32>
    %309 = arith.addf %307, %308 : vector<2x24xf32>
    %310 = arith.negf %309 : vector<2x24xf32>
    %311 = math.exp %310 : vector<2x24xf32>
    %cst_61 = arith.constant 1.000000e+00 : f32
    %312 = vector.broadcast %cst_61 : f32 to vector<2x24xf32>
    %313 = arith.addf %312, %311 : vector<2x24xf32>
    %314 = arith.divf %312, %313 : vector<2x24xf32>
    %315 = vector.extract_strided_slice %304 {offsets = [0, 128], sizes = [2, 24], strides = [1, 1]} : vector<2x384xf32> to vector<2x24xf32>
    %316 = vector.extract_strided_slice %306 {offsets = [0, 128], sizes = [2, 24], strides = [1, 1]} : vector<2x384xf32> to vector<2x24xf32>
    %317 = arith.addf %315, %316 : vector<2x24xf32>
    %318 = arith.negf %317 : vector<2x24xf32>
    %319 = math.exp %318 : vector<2x24xf32>
    %cst_62 = arith.constant 1.000000e+00 : f32
    %320 = vector.broadcast %cst_62 : f32 to vector<2x24xf32>
    %321 = arith.addf %320, %319 : vector<2x24xf32>
    %322 = arith.divf %320, %321 : vector<2x24xf32>
    %323 = vector.extract_strided_slice %304 {offsets = [0, 256], sizes = [2, 24], strides = [1, 1]} : vector<2x384xf32> to vector<2x24xf32>
    %324 = vector.extract_strided_slice %306 {offsets = [0, 256], sizes = [2, 24], strides = [1, 1]} : vector<2x384xf32> to vector<2x24xf32>
    %325 = vector.broadcast %13 : vector<1x24xf32> to vector<2x24xf32>
    %326 = arith.addf %324, %325 : vector<2x24xf32>
    %327 = arith.mulf %314, %326 : vector<2x24xf32>
    %328 = arith.addf %323, %327 : vector<2x24xf32>
    %329 = math.tanh %328 : vector<2x24xf32>
    %cst_63 = arith.constant 1.000000e+00 : f32
    %330 = vector.broadcast %cst_63 : f32 to vector<2x24xf32>
    %331 = arith.subf %330, %322 : vector<2x24xf32>
    %332 = arith.mulf %331, %329 : vector<2x24xf32>
    %333 = arith.mulf %322, %302 : vector<2x24xf32>
    %334 = arith.addf %332, %333 : vector<2x24xf32>
    %c18 = arith.constant 18 : index
    %c0_64 = arith.constant 0 : index
    %335 = vector.load %arg5[%c18, %c0_64] : memref<32x24xf32, #tpu.memory_space<vmem>>, vector<2x24xf32>
    tpu.vector_store %arg5[%c18, %c0_64], %334 {strides = array<i32>} : memref<32x24xf32, #tpu.memory_space<vmem>>, vector<2x24xf32>,
    %336 = vector.extract_strided_slice %12 {offsets = [20, 0], sizes = [2, 384], strides = [1, 1]} : vector<32x384xf32> to vector<2x384xf32>
    %337 = arith.truncf %334 : vector<2x24xf32> to vector<2x24xbf16>
    %cst_65 = arith.constant dense<0.000000e+00> : vector<2x384xf32>
    %338 = tpu.matmul %337, %14, %cst_65 {dimension_numbers = #tpu.dot_dimension_numbers<[1], [0], [0], [1], [0, 0, 1, 1], [], []>} : vector<2x24xbf16>, vector<24x384xbf16>, vector<2x384xf32> -> vector<2x384xf32>
    %339 = vector.extract_strided_slice %336 {offsets = [0, 0], sizes = [2, 24], strides = [1, 1]} : vector<2x384xf32> to vector<2x24xf32>
    %340 = vector.extract_strided_slice %338 {offsets = [0, 0], sizes = [2, 24], strides = [1, 1]} : vector<2x384xf32> to vector<2x24xf32>
    %341 = arith.addf %339, %340 : vector<2x24xf32>
    %342 = arith.negf %341 : vector<2x24xf32>
    %343 = math.exp %342 : vector<2x24xf32>
    %cst_66 = arith.constant 1.000000e+00 : f32
    %344 = vector.broadcast %cst_66 : f32 to vector<2x24xf32>
    %345 = arith.addf %344, %343 : vector<2x24xf32>
    %346 = arith.divf %344, %345 : vector<2x24xf32>
    %347 = vector.extract_strided_slice %336 {offsets = [0, 128], sizes = [2, 24], strides = [1, 1]} : vector<2x384xf32> to vector<2x24xf32>
    %348 = vector.extract_strided_slice %338 {offsets = [0, 128], sizes = [2, 24], strides = [1, 1]} : vector<2x384xf32> to vector<2x24xf32>
    %349 = arith.addf %347, %348 : vector<2x24xf32>
    %350 = arith.negf %349 : vector<2x24xf32>
    %351 = math.exp %350 : vector<2x24xf32>
    %cst_67 = arith.constant 1.000000e+00 : f32
    %352 = vector.broadcast %cst_67 : f32 to vector<2x24xf32>
    %353 = arith.addf %352, %351 : vector<2x24xf32>
    %354 = arith.divf %352, %353 : vector<2x24xf32>
    %355 = vector.extract_strided_slice %336 {offsets = [0, 256], sizes = [2, 24], strides = [1, 1]} : vector<2x384xf32> to vector<2x24xf32>
    %356 = vector.extract_strided_slice %338 {offsets = [0, 256], sizes = [2, 24], strides = [1, 1]} : vector<2x384xf32> to vector<2x24xf32>
    %357 = vector.broadcast %13 : vector<1x24xf32> to vector<2x24xf32>
    %358 = arith.addf %356, %357 : vector<2x24xf32>
    %359 = arith.mulf %346, %358 : vector<2x24xf32>
    %360 = arith.addf %355, %359 : vector<2x24xf32>
    %361 = math.tanh %360 : vector<2x24xf32>
    %cst_68 = arith.constant 1.000000e+00 : f32
    %362 = vector.broadcast %cst_68 : f32 to vector<2x24xf32>
    %363 = arith.subf %362, %354 : vector<2x24xf32>
    %364 = arith.mulf %363, %361 : vector<2x24xf32>
    %365 = arith.mulf %354, %334 : vector<2x24xf32>
    %366 = arith.addf %364, %365 : vector<2x24xf32>
    %c20 = arith.constant 20 : index
    %c0_69 = arith.constant 0 : index
    %367 = vector.load %arg5[%c20, %c0_69] : memref<32x24xf32, #tpu.memory_space<vmem>>, vector<2x24xf32>
    tpu.vector_store %arg5[%c20, %c0_69], %366 {strides = array<i32>} : memref<32x24xf32, #tpu.memory_space<vmem>>, vector<2x24xf32>,
    %368 = vector.extract_strided_slice %12 {offsets = [22, 0], sizes = [2, 384], strides = [1, 1]} : vector<32x384xf32> to vector<2x384xf32>
    %369 = arith.truncf %366 : vector<2x24xf32> to vector<2x24xbf16>
    %cst_70 = arith.constant dense<0.000000e+00> : vector<2x384xf32>
    %370 = tpu.matmul %369, %14, %cst_70 {dimension_numbers = #tpu.dot_dimension_numbers<[1], [0], [0], [1], [0, 0, 1, 1], [], []>} : vector<2x24xbf16>, vector<24x384xbf16>, vector<2x384xf32> -> vector<2x384xf32>
    %371 = vector.extract_strided_slice %368 {offsets = [0, 0], sizes = [2, 24], strides = [1, 1]} : vector<2x384xf32> to vector<2x24xf32>
    %372 = vector.extract_strided_slice %370 {offsets = [0, 0], sizes = [2, 24], strides = [1, 1]} : vector<2x384xf32> to vector<2x24xf32>
    %373 = arith.addf %371, %372 : vector<2x24xf32>
    %374 = arith.negf %373 : vector<2x24xf32>
    %375 = math.exp %374 : vector<2x24xf32>
    %cst_71 = arith.constant 1.000000e+00 : f32
    %376 = vector.broadcast %cst_71 : f32 to vector<2x24xf32>
    %377 = arith.addf %376, %375 : vector<2x24xf32>
    %378 = arith.divf %376, %377 : vector<2x24xf32>
    %379 = vector.extract_strided_slice %368 {offsets = [0, 128], sizes = [2, 24], strides = [1, 1]} : vector<2x384xf32> to vector<2x24xf32>
    %380 = vector.extract_strided_slice %370 {offsets = [0, 128], sizes = [2, 24], strides = [1, 1]} : vector<2x384xf32> to vector<2x24xf32>
    %381 = arith.addf %379, %380 : vector<2x24xf32>
    %382 = arith.negf %381 : vector<2x24xf32>
    %383 = math.exp %382 : vector<2x24xf32>
    %cst_72 = arith.constant 1.000000e+00 : f32
    %384 = vector.broadcast %cst_72 : f32 to vector<2x24xf32>
    %385 = arith.addf %384, %383 : vector<2x24xf32>
    %386 = arith.divf %384, %385 : vector<2x24xf32>
    %387 = vector.extract_strided_slice %368 {offsets = [0, 256], sizes = [2, 24], strides = [1, 1]} : vector<2x384xf32> to vector<2x24xf32>
    %388 = vector.extract_strided_slice %370 {offsets = [0, 256], sizes = [2, 24], strides = [1, 1]} : vector<2x384xf32> to vector<2x24xf32>
    %389 = vector.broadcast %13 : vector<1x24xf32> to vector<2x24xf32>
    %390 = arith.addf %388, %389 : vector<2x24xf32>
    %391 = arith.mulf %378, %390 : vector<2x24xf32>
    %392 = arith.addf %387, %391 : vector<2x24xf32>
    %393 = math.tanh %392 : vector<2x24xf32>
    %cst_73 = arith.constant 1.000000e+00 : f32
    %394 = vector.broadcast %cst_73 : f32 to vector<2x24xf32>
    %395 = arith.subf %394, %386 : vector<2x24xf32>
    %396 = arith.mulf %395, %393 : vector<2x24xf32>
    %397 = arith.mulf %386, %366 : vector<2x24xf32>
    %398 = arith.addf %396, %397 : vector<2x24xf32>
    %c22 = arith.constant 22 : index
    %c0_74 = arith.constant 0 : index
    %399 = vector.load %arg5[%c22, %c0_74] : memref<32x24xf32, #tpu.memory_space<vmem>>, vector<2x24xf32>
    tpu.vector_store %arg5[%c22, %c0_74], %398 {strides = array<i32>} : memref<32x24xf32, #tpu.memory_space<vmem>>, vector<2x24xf32>,
    %400 = vector.extract_strided_slice %12 {offsets = [24, 0], sizes = [2, 384], strides = [1, 1]} : vector<32x384xf32> to vector<2x384xf32>
    %401 = arith.truncf %398 : vector<2x24xf32> to vector<2x24xbf16>
    %cst_75 = arith.constant dense<0.000000e+00> : vector<2x384xf32>
    %402 = tpu.matmul %401, %14, %cst_75 {dimension_numbers = #tpu.dot_dimension_numbers<[1], [0], [0], [1], [0, 0, 1, 1], [], []>} : vector<2x24xbf16>, vector<24x384xbf16>, vector<2x384xf32> -> vector<2x384xf32>
    %403 = vector.extract_strided_slice %400 {offsets = [0, 0], sizes = [2, 24], strides = [1, 1]} : vector<2x384xf32> to vector<2x24xf32>
    %404 = vector.extract_strided_slice %402 {offsets = [0, 0], sizes = [2, 24], strides = [1, 1]} : vector<2x384xf32> to vector<2x24xf32>
    %405 = arith.addf %403, %404 : vector<2x24xf32>
    %406 = arith.negf %405 : vector<2x24xf32>
    %407 = math.exp %406 : vector<2x24xf32>
    %cst_76 = arith.constant 1.000000e+00 : f32
    %408 = vector.broadcast %cst_76 : f32 to vector<2x24xf32>
    %409 = arith.addf %408, %407 : vector<2x24xf32>
    %410 = arith.divf %408, %409 : vector<2x24xf32>
    %411 = vector.extract_strided_slice %400 {offsets = [0, 128], sizes = [2, 24], strides = [1, 1]} : vector<2x384xf32> to vector<2x24xf32>
    %412 = vector.extract_strided_slice %402 {offsets = [0, 128], sizes = [2, 24], strides = [1, 1]} : vector<2x384xf32> to vector<2x24xf32>
    %413 = arith.addf %411, %412 : vector<2x24xf32>
    %414 = arith.negf %413 : vector<2x24xf32>
    %415 = math.exp %414 : vector<2x24xf32>
    %cst_77 = arith.constant 1.000000e+00 : f32
    %416 = vector.broadcast %cst_77 : f32 to vector<2x24xf32>
    %417 = arith.addf %416, %415 : vector<2x24xf32>
    %418 = arith.divf %416, %417 : vector<2x24xf32>
    %419 = vector.extract_strided_slice %400 {offsets = [0, 256], sizes = [2, 24], strides = [1, 1]} : vector<2x384xf32> to vector<2x24xf32>
    %420 = vector.extract_strided_slice %402 {offsets = [0, 256], sizes = [2, 24], strides = [1, 1]} : vector<2x384xf32> to vector<2x24xf32>
    %421 = vector.broadcast %13 : vector<1x24xf32> to vector<2x24xf32>
    %422 = arith.addf %420, %421 : vector<2x24xf32>
    %423 = arith.mulf %410, %422 : vector<2x24xf32>
    %424 = arith.addf %419, %423 : vector<2x24xf32>
    %425 = math.tanh %424 : vector<2x24xf32>
    %cst_78 = arith.constant 1.000000e+00 : f32
    %426 = vector.broadcast %cst_78 : f32 to vector<2x24xf32>
    %427 = arith.subf %426, %418 : vector<2x24xf32>
    %428 = arith.mulf %427, %425 : vector<2x24xf32>
    %429 = arith.mulf %418, %398 : vector<2x24xf32>
    %430 = arith.addf %428, %429 : vector<2x24xf32>
    %c24 = arith.constant 24 : index
    %c0_79 = arith.constant 0 : index
    %431 = vector.load %arg5[%c24, %c0_79] : memref<32x24xf32, #tpu.memory_space<vmem>>, vector<2x24xf32>
    tpu.vector_store %arg5[%c24, %c0_79], %430 {strides = array<i32>} : memref<32x24xf32, #tpu.memory_space<vmem>>, vector<2x24xf32>,
    %432 = vector.extract_strided_slice %12 {offsets = [26, 0], sizes = [2, 384], strides = [1, 1]} : vector<32x384xf32> to vector<2x384xf32>
    %433 = arith.truncf %430 : vector<2x24xf32> to vector<2x24xbf16>
    %cst_80 = arith.constant dense<0.000000e+00> : vector<2x384xf32>
    %434 = tpu.matmul %433, %14, %cst_80 {dimension_numbers = #tpu.dot_dimension_numbers<[1], [0], [0], [1], [0, 0, 1, 1], [], []>} : vector<2x24xbf16>, vector<24x384xbf16>, vector<2x384xf32> -> vector<2x384xf32>
    %435 = vector.extract_strided_slice %432 {offsets = [0, 0], sizes = [2, 24], strides = [1, 1]} : vector<2x384xf32> to vector<2x24xf32>
    %436 = vector.extract_strided_slice %434 {offsets = [0, 0], sizes = [2, 24], strides = [1, 1]} : vector<2x384xf32> to vector<2x24xf32>
    %437 = arith.addf %435, %436 : vector<2x24xf32>
    %438 = arith.negf %437 : vector<2x24xf32>
    %439 = math.exp %438 : vector<2x24xf32>
    %cst_81 = arith.constant 1.000000e+00 : f32
    %440 = vector.broadcast %cst_81 : f32 to vector<2x24xf32>
    %441 = arith.addf %440, %439 : vector<2x24xf32>
    %442 = arith.divf %440, %441 : vector<2x24xf32>
    %443 = vector.extract_strided_slice %432 {offsets = [0, 128], sizes = [2, 24], strides = [1, 1]} : vector<2x384xf32> to vector<2x24xf32>
    %444 = vector.extract_strided_slice %434 {offsets = [0, 128], sizes = [2, 24], strides = [1, 1]} : vector<2x384xf32> to vector<2x24xf32>
    %445 = arith.addf %443, %444 : vector<2x24xf32>
    %446 = arith.negf %445 : vector<2x24xf32>
    %447 = math.exp %446 : vector<2x24xf32>
    %cst_82 = arith.constant 1.000000e+00 : f32
    %448 = vector.broadcast %cst_82 : f32 to vector<2x24xf32>
    %449 = arith.addf %448, %447 : vector<2x24xf32>
    %450 = arith.divf %448, %449 : vector<2x24xf32>
    %451 = vector.extract_strided_slice %432 {offsets = [0, 256], sizes = [2, 24], strides = [1, 1]} : vector<2x384xf32> to vector<2x24xf32>
    %452 = vector.extract_strided_slice %434 {offsets = [0, 256], sizes = [2, 24], strides = [1, 1]} : vector<2x384xf32> to vector<2x24xf32>
    %453 = vector.broadcast %13 : vector<1x24xf32> to vector<2x24xf32>
    %454 = arith.addf %452, %453 : vector<2x24xf32>
    %455 = arith.mulf %442, %454 : vector<2x24xf32>
    %456 = arith.addf %451, %455 : vector<2x24xf32>
    %457 = math.tanh %456 : vector<2x24xf32>
    %cst_83 = arith.constant 1.000000e+00 : f32
    %458 = vector.broadcast %cst_83 : f32 to vector<2x24xf32>
    %459 = arith.subf %458, %450 : vector<2x24xf32>
    %460 = arith.mulf %459, %457 : vector<2x24xf32>
    %461 = arith.mulf %450, %430 : vector<2x24xf32>
    %462 = arith.addf %460, %461 : vector<2x24xf32>
    %c26 = arith.constant 26 : index
    %c0_84 = arith.constant 0 : index
    %463 = vector.load %arg5[%c26, %c0_84] : memref<32x24xf32, #tpu.memory_space<vmem>>, vector<2x24xf32>
    tpu.vector_store %arg5[%c26, %c0_84], %462 {strides = array<i32>} : memref<32x24xf32, #tpu.memory_space<vmem>>, vector<2x24xf32>,
    %464 = vector.extract_strided_slice %12 {offsets = [28, 0], sizes = [2, 384], strides = [1, 1]} : vector<32x384xf32> to vector<2x384xf32>
    %465 = arith.truncf %462 : vector<2x24xf32> to vector<2x24xbf16>
    %cst_85 = arith.constant dense<0.000000e+00> : vector<2x384xf32>
    %466 = tpu.matmul %465, %14, %cst_85 {dimension_numbers = #tpu.dot_dimension_numbers<[1], [0], [0], [1], [0, 0, 1, 1], [], []>} : vector<2x24xbf16>, vector<24x384xbf16>, vector<2x384xf32> -> vector<2x384xf32>
    %467 = vector.extract_strided_slice %464 {offsets = [0, 0], sizes = [2, 24], strides = [1, 1]} : vector<2x384xf32> to vector<2x24xf32>
    %468 = vector.extract_strided_slice %466 {offsets = [0, 0], sizes = [2, 24], strides = [1, 1]} : vector<2x384xf32> to vector<2x24xf32>
    %469 = arith.addf %467, %468 : vector<2x24xf32>
    %470 = arith.negf %469 : vector<2x24xf32>
    %471 = math.exp %470 : vector<2x24xf32>
    %cst_86 = arith.constant 1.000000e+00 : f32
    %472 = vector.broadcast %cst_86 : f32 to vector<2x24xf32>
    %473 = arith.addf %472, %471 : vector<2x24xf32>
    %474 = arith.divf %472, %473 : vector<2x24xf32>
    %475 = vector.extract_strided_slice %464 {offsets = [0, 128], sizes = [2, 24], strides = [1, 1]} : vector<2x384xf32> to vector<2x24xf32>
    %476 = vector.extract_strided_slice %466 {offsets = [0, 128], sizes = [2, 24], strides = [1, 1]} : vector<2x384xf32> to vector<2x24xf32>
    %477 = arith.addf %475, %476 : vector<2x24xf32>
    %478 = arith.negf %477 : vector<2x24xf32>
    %479 = math.exp %478 : vector<2x24xf32>
    %cst_87 = arith.constant 1.000000e+00 : f32
    %480 = vector.broadcast %cst_87 : f32 to vector<2x24xf32>
    %481 = arith.addf %480, %479 : vector<2x24xf32>
    %482 = arith.divf %480, %481 : vector<2x24xf32>
    %483 = vector.extract_strided_slice %464 {offsets = [0, 256], sizes = [2, 24], strides = [1, 1]} : vector<2x384xf32> to vector<2x24xf32>
    %484 = vector.extract_strided_slice %466 {offsets = [0, 256], sizes = [2, 24], strides = [1, 1]} : vector<2x384xf32> to vector<2x24xf32>
    %485 = vector.broadcast %13 : vector<1x24xf32> to vector<2x24xf32>
    %486 = arith.addf %484, %485 : vector<2x24xf32>
    %487 = arith.mulf %474, %486 : vector<2x24xf32>
    %488 = arith.addf %483, %487 : vector<2x24xf32>
    %489 = math.tanh %488 : vector<2x24xf32>
    %cst_88 = arith.constant 1.000000e+00 : f32
    %490 = vector.broadcast %cst_88 : f32 to vector<2x24xf32>
    %491 = arith.subf %490, %482 : vector<2x24xf32>
    %492 = arith.mulf %491, %489 : vector<2x24xf32>
    %493 = arith.mulf %482, %462 : vector<2x24xf32>
    %494 = arith.addf %492, %493 : vector<2x24xf32>
    %c28 = arith.constant 28 : index
    %c0_89 = arith.constant 0 : index
    %495 = vector.load %arg5[%c28, %c0_89] : memref<32x24xf32, #tpu.memory_space<vmem>>, vector<2x24xf32>
    tpu.vector_store %arg5[%c28, %c0_89], %494 {strides = array<i32>} : memref<32x24xf32, #tpu.memory_space<vmem>>, vector<2x24xf32>,
    %496 = vector.extract_strided_slice %12 {offsets = [30, 0], sizes = [2, 384], strides = [1, 1]} : vector<32x384xf32> to vector<2x384xf32>
    %497 = arith.truncf %494 : vector<2x24xf32> to vector<2x24xbf16>
    %cst_90 = arith.constant dense<0.000000e+00> : vector<2x384xf32>
    %498 = tpu.matmul %497, %14, %cst_90 {dimension_numbers = #tpu.dot_dimension_numbers<[1], [0], [0], [1], [0, 0, 1, 1], [], []>} : vector<2x24xbf16>, vector<24x384xbf16>, vector<2x384xf32> -> vector<2x384xf32>
    %499 = vector.extract_strided_slice %496 {offsets = [0, 0], sizes = [2, 24], strides = [1, 1]} : vector<2x384xf32> to vector<2x24xf32>
    %500 = vector.extract_strided_slice %498 {offsets = [0, 0], sizes = [2, 24], strides = [1, 1]} : vector<2x384xf32> to vector<2x24xf32>
    %501 = arith.addf %499, %500 : vector<2x24xf32>
    %502 = arith.negf %501 : vector<2x24xf32>
    %503 = math.exp %502 : vector<2x24xf32>
    %cst_91 = arith.constant 1.000000e+00 : f32
    %504 = vector.broadcast %cst_91 : f32 to vector<2x24xf32>
    %505 = arith.addf %504, %503 : vector<2x24xf32>
    %506 = arith.divf %504, %505 : vector<2x24xf32>
    %507 = vector.extract_strided_slice %496 {offsets = [0, 128], sizes = [2, 24], strides = [1, 1]} : vector<2x384xf32> to vector<2x24xf32>
    %508 = vector.extract_strided_slice %498 {offsets = [0, 128], sizes = [2, 24], strides = [1, 1]} : vector<2x384xf32> to vector<2x24xf32>
    %509 = arith.addf %507, %508 : vector<2x24xf32>
    %510 = arith.negf %509 : vector<2x24xf32>
    %511 = math.exp %510 : vector<2x24xf32>
    %cst_92 = arith.constant 1.000000e+00 : f32
    %512 = vector.broadcast %cst_92 : f32 to vector<2x24xf32>
    %513 = arith.addf %512, %511 : vector<2x24xf32>
    %514 = arith.divf %512, %513 : vector<2x24xf32>
    %515 = vector.extract_strided_slice %496 {offsets = [0, 256], sizes = [2, 24], strides = [1, 1]} : vector<2x384xf32> to vector<2x24xf32>
    %516 = vector.extract_strided_slice %498 {offsets = [0, 256], sizes = [2, 24], strides = [1, 1]} : vector<2x384xf32> to vector<2x24xf32>
    %517 = vector.broadcast %13 : vector<1x24xf32> to vector<2x24xf32>
    %518 = arith.addf %516, %517 : vector<2x24xf32>
    %519 = arith.mulf %506, %518 : vector<2x24xf32>
    %520 = arith.addf %515, %519 : vector<2x24xf32>
    %521 = math.tanh %520 : vector<2x24xf32>
    %cst_93 = arith.constant 1.000000e+00 : f32
    %522 = vector.broadcast %cst_93 : f32 to vector<2x24xf32>
    %523 = arith.subf %522, %514 : vector<2x24xf32>
    %524 = arith.mulf %523, %521 : vector<2x24xf32>
    %525 = arith.mulf %514, %494 : vector<2x24xf32>
    %526 = arith.addf %524, %525 : vector<2x24xf32>
    %c30 = arith.constant 30 : index
    %c0_94 = arith.constant 0 : index
    %527 = vector.load %arg5[%c30, %c0_94] : memref<32x24xf32, #tpu.memory_space<vmem>>, vector<2x24xf32>
    tpu.vector_store %arg5[%c30, %c0_94], %526 {strides = array<i32>} : memref<32x24xf32, #tpu.memory_space<vmem>>, vector<2x24xf32>,
    %c0_95 = arith.constant 0 : index
    %c0_96 = arith.constant 0 : index
    %528 = vector.load %arg5[%c0_95, %c0_96] : memref<32x24xf32, #tpu.memory_space<vmem>>, vector<32x24xf32>
    %c40 = arith.constant 40 : index
    %c0_97 = arith.constant 0 : index
    %529 = vector.load %arg2[%c40, %c0_97] : memref<64x384xf32, #tpu.memory_space<vmem>>, vector<24x128xf32>
    %c34 = arith.constant 34 : index
    %c0_98 = arith.constant 0 : index
    %530 = vector.load %arg2[%c34, %c0_98] : memref<64x384xf32, #tpu.memory_space<vmem>>, vector<1x128xf32>
    %cst_99 = arith.constant dense<0.000000e+00> : vector<32x128xf32>
    %531 = tpu.matmul %528, %529, %cst_99 {dimension_numbers = #tpu.dot_dimension_numbers<[1], [0], [0], [1], [0, 0, 1, 1], [], []>} : vector<32x24xf32>, vector<24x128xf32>, vector<32x128xf32> -> vector<32x128xf32>
    %532 = vector.broadcast %530 : vector<1x128xf32> to vector<32x128xf32>
    %533 = arith.addf %531, %532 : vector<32x128xf32>
    %cst_100 = arith.constant 0.000000e+00 : f32
    %534 = vector.broadcast %cst_100 : f32 to vector<32x128xf32>
    %535 = arith.maximumf %533, %534 : vector<32x128xf32>
    %c0_101 = arith.constant 0 : index
    %c0_102 = arith.constant 0 : index
    %536 = vector.load %arg4[%c0_101, %c0_102] : memref<32x128xf32, #tpu.memory_space<vmem>>, vector<32x128xf32>
    tpu.vector_store %arg4[%c0_101, %c0_102], %535 {strides = array<i32>} : memref<32x128xf32, #tpu.memory_space<vmem>>, vector<32x128xf32>,
    return
  }
  func.func @transform_0(%arg0: i32) -> (i32, i32) {
    %c0_i32 = arith.constant 0 : i32
    %c0_i32_0 = arith.constant 0 : i32
    %c0_i32_1 = arith.constant 0 : i32
    return %c0_i32, %c0_i32_0 : i32, i32
  }
  func.func @transform_1(%arg0: i32) -> (i32, i32) {
    %c0_i32 = arith.constant 0 : i32
    %c0_i32_0 = arith.constant 0 : i32
    %c0_i32_1 = arith.constant 0 : i32
    return %c0_i32, %c0_i32_0 : i32, i32
  }
  func.func @transform_2(%arg0: i32) -> (i32, i32) {
    %c0_i32 = arith.constant 0 : i32
    %c0_i32_0 = arith.constant 0 : i32
    %c0_i32_1 = arith.constant 0 : i32
    return %c0_i32, %c0_i32_0 : i32, i32
  }
  func.func @transform_3(%arg0: i32) -> (i32, i32) {
    %c0_i32 = arith.constant 0 : i32
    %c0_i32_0 = arith.constant 0 : i32
    %c0_i32_1 = arith.constant 0 : i32
    return %c0_i32, %c0_i32_0 : i32, i32
  }
}

</mosaic_0001>

<llo_original>
// kernel: forward.1
$region0: #{forward.1}
  #allocation0 [shape = 'u32[]', space=smem, size = 0x4, offset = 0x4, fixed_abs, tag = 'smem constant byte address 0x4 - core index']
  #allocation1 [shape = 'u32[72,128]{1,0:T(1,128)}', space=vmem, size = 0x9000, scoped, tag = 'internal scratch']
  #allocation2 [shape = 'f32[32,24]{1,0:T(8,128)}', space=vmem, size = 0x4000, scoped, tag = 'scratch operand']
  %s0 = inlined_call_operand.vmem [shape: f32[32,12], index: 0, kind: input, shape index: {}]
  %s1 = inlined_call_operand.hbm [shape: f32[64,384], index: 1, kind: input, shape index: {}]
  %s2 = inlined_call_operand.vmem [shape: bf16[24,384], index: 2, kind: input, shape index: {}]
  %s3 = inlined_call_operand.vmem [shape: f32[32,128], index: 3, kind: output, shape index: {}]
  %s4 = sld [smem:[#allocation0]]
  $region26: #{forward.1} parent=0
    _
  %s6 = ssub.s32 1, %s4
  %s7 = scalar_select 0, %s6, %s4
  $region1: #{forward.1} parent=0
    #allocation3 [shape = 'u8[98304]{0}', space=vmem, size = 0x18000, scoped, tag = 'input window, operand 1, single buffered']
    #allocation4 [shape = 's32[1]{0}', space=sflag, size = 0x4, scoped, tag = 'scoped memory for forward.1']
    %8 = vsyncpa [#allocation4], 0
    // Predicated region
    $region2: #{forward.1} parent=1 // pred_check
      _
    $region3: #{forward.1} parent=1 // pred_check_branch
      %10 = sbr.rel (0) target = $region5
    $region4: #{forward.1} parent=1 // pred_region
      _
    $region5: #{forward.1} parent=1 // pred_fallthru
      _
    // Predicated region
    $region6: #{forward.1} parent=1 // pred_check
      _
    $region7: #{forward.1} parent=1 // pred_check_branch
      %12 = sbr.rel (0) target = $region9
    $region8: #{forward.1} parent=1 // pred_region
      %14 = vsyncadd [#allocation4], 0
      %s15 = sshll.u32 %s1, 4
      %s16 = int_to_ptr.hbm [resolvable:$true] %s15
      %s17 = sshll.u32 [#allocation3], 4
      %s18 = int_to_ptr.vmem [resolvable:$true] %s17
      %23 = dma.hbm_to_vmem [thread:$0]  %s16, 3072, %s18, [#allocation4], 384, 384, 24
    $region9: #{forward.1} parent=1 // pred_fallthru
      _
    // Predicated region
    $region10: #{forward.1} parent=1 // pred_check
      _
    $region11: #{forward.1} parent=1 // pred_check_branch
      %25 = sbr.rel (0) target = $region13
    $region12: #{forward.1} parent=1 // pred_region
      _
    $region13: #{forward.1} parent=1 // pred_fallthru
      _
    // Predicated region
    $region14: #{forward.1} parent=1 // pred_check
      _
    $region15: #{forward.1} parent=1 // pred_check_branch
      %27 = sbr.rel (0) target = $region17
    $region16: #{forward.1} parent=1 // pred_region
      %29 = dma.done [#allocation4], 3072
    $region17: #{forward.1} parent=1 // pred_fallthru
      _
    %v31 = vld [vmem:[%s0] sm:$0xff]
    %v32 = vld [vmem:[%s0 + $0x8] sm:$0xff]
    %v33 = vld [vmem:[%s0 + $0x10] sm:$0xff]
    %v34 = vld [vmem:[%s0 + $0x18] sm:$0xff]
    %v35 = vld [vmem:[#allocation3] sm:$0xff]
    %v36 = vld [vmem:[#allocation3 + $0x18] sm:$0xf]
    %v37 = vld [vmem:[#allocation3 + $0x1c] ss:$0 sm:$0xff]
    %vm38 = vcmask 97280
    %v40 = vsel %vm38, %v31, 0
    %v43 = vsel %vm38, %v32, 0
    %v46 = vsel %vm38, %v33, 0
    %v49 = vsel %vm38, %v34, 0
    %vm51 = vcmask 1043456
    %v53 = vsel %vm51, %v36, 0
    %55 = vmatpush.msra.mxu0 0.0
    %56 = vmatpush.msra.mxu0 0.0
    %57 = vmatpush.msra.mxu0 0.0
    %58 = vmatpush.msra.mxu0 0.0
    %59 = vmatpush.msra.mxu0 0.0
    %60 = vmatpush.msra.mxu0 0.0
    %61 = vmatpush.msra.mxu0 0.0
    %62 = vmatpush.msra.mxu0 0.0
    %63 = vmatpush.msra.mxu0 0.0
    %64 = vmatpush.msra.mxu0 0.0
    %65 = vmatpush.msra.mxu0 0.0
    %66 = vmatpush.msra.mxu0 0.0
    %67 = vmatpush.msra.mxu0 0.0
    %68 = vmatpush.msra.mxu0 0.0
    %69 = vmatpush.msra.mxu0 %v53
    %70 = vmatpush.msra.mxu0 %v35
    %71 = vmatmul.f32.gmra.mxu0 %v40
    %v72 = vpop.f32.mrf.mxu0
    %v73 = vadd.f32 %v37, %v72
    %74 = vmatmul.f32.gmra.mxu0 %v43
    %v75 = vpop.f32.mrf.mxu0
    %v76 = vadd.f32 %v37, %v75
    %77 = vmatmul.f32.gmra.mxu0 %v46
    %v78 = vpop.f32.mrf.mxu0
    %v79 = vadd.f32 %v37, %v78
    %80 = vmatmul.f32.gmra.mxu0 %v49
    %v81 = vpop.f32.mrf.mxu0
    %v82 = vadd.f32 %v37, %v81
    %83 = vdwg.mxu0
    %v84 = vmax.f32 %v73, 0.0
    %v85 = vmax.f32 %v76, 0.0
    %v86 = vmax.f32 %v79, 0.0
    %v87 = vmax.f32 %v82, 0.0
    %v88 = vld [vmem:[#allocation3 + $0x30] sm:$0xff]
    %v89 = vld [vmem:[#allocation3 + $0x38] sm:$0xff]
    %v90 = vld [vmem:[#allocation3 + $0x40] sm:$0xff]
    %v91 = vld [vmem:[#allocation3 + $0x48] sm:$0xff]
    %v92 = vld [vmem:[#allocation3 + $0x50] sm:$0xff]
    %v93 = vld [vmem:[#allocation3 + $0x58] sm:$0xff]
    %s94 = scalar_lea.vmem [#allocation3], 96
    %v95 = vld [vmem:[%s94] ss:$8 sm:$0x7]
    %v97 = vperm.slane %v95, 0
    %v98 = vperm.slane %v95, 1
    %v99 = vperm.slane %v95, 2
    %vm103 = vcmask 130048
    %v105 = vsel %vm103, %v84, 0
    %v108 = vsel %vm103, %v85, 0
    %v111 = vsel %vm103, %v86, 0
    %v114 = vsel %vm103, %v87, 0
    %116 = vmatpush.msra.mxu0 0.0
    %117 = vmatpush.msra.mxu0 0.0
    %118 = vmatpush.msra.mxu0 0.0
    %119 = vmatpush.msra.mxu0 0.0
    %120 = vmatpush.msra.mxu0 0.0
    %121 = vmatpush.msra.mxu0 0.0
    %122 = vmatpush.msra.mxu0 0.0
    %123 = vmatpush.msra.mxu0 0.0
    %124 = vmatpush.msra.mxu0 0.0
    %125 = vmatpush.msra.mxu0 0.0
    %126 = vmatpush.msra.mxu0 0.0
    %127 = vmatpush.msra.mxu0 0.0
    %128 = vmatpush.msra.mxu0 0.0
    %129 = vmatpush.msra.mxu0 0.0
    %130 = vmatpush.msra.mxu0 %v91
    %131 = vmatpush.msra.mxu0 %v88
    %132 = vmatmul.f32.gmra.mxu0 %v105
    %v133 = vpop.f32.mrf.mxu0
    %v134 = vadd.f32 %v97, %v133
    %135 = vmatmul.f32.gmra.mxu0 %v108
    %v136 = vpop.f32.mrf.mxu0
    %v137 = vadd.f32 %v97, %v136
    %138 = vmatmul.f32.gmra.mxu0 %v111
    %v139 = vpop.f32.mrf.mxu0
    %v140 = vadd.f32 %v97, %v139
    %141 = vmatmul.f32.gmra.mxu0 %v114
    %v142 = vpop.f32.mrf.mxu0
    %v143 = vadd.f32 %v97, %v142
    %144 = vdwg.mxu0
    %145 = vmatpush.msra.mxu0 0.0
    %146 = vmatpush.msra.mxu0 0.0
    %147 = vmatpush.msra.mxu0 0.0
    %148 = vmatpush.msra.mxu0 0.0
    %149 = vmatpush.msra.mxu0 0.0
    %150 = vmatpush.msra.mxu0 0.0
    %151 = vmatpush.msra.mxu0 0.0
    %152 = vmatpush.msra.mxu0 0.0
    %153 = vmatpush.msra.mxu0 0.0
    %154 = vmatpush.msra.mxu0 0.0
    %155 = vmatpush.msra.mxu0 0.0
    %156 = vmatpush.msra.mxu0 0.0
    %157 = vmatpush.msra.mxu0 0.0
    %158 = vmatpush.msra.mxu0 0.0
    %159 = vmatpush.msra.mxu0 %v92
    %160 = vmatpush.msra.mxu0 %v89
    %161 = vmatmul.f32.gmra.mxu0 %v105
    %v162 = vpop.f32.mrf.mxu0
    %v163 = vadd.f32 %v98, %v162
    %164 = vmatmul.f32.gmra.mxu0 %v108
    %v165 = vpop.f32.mrf.mxu0
    %v166 = vadd.f32 %v98, %v165
    %167 = vmatmul.f32.gmra.mxu0 %v111
    %v168 = vpop.f32.mrf.mxu0
    %v169 = vadd.f32 %v98, %v168
    %170 = vmatmul.f32.gmra.mxu0 %v114
    %v171 = vpop.f32.mrf.mxu0
    %v172 = vadd.f32 %v98, %v171
    %173 = vdwg.mxu0
    %174 = vmatpush.msra.mxu0 0.0
    %175 = vmatpush.msra.mxu0 0.0
    %176 = vmatpush.msra.mxu0 0.0
    %177 = vmatpush.msra.mxu0 0.0
    %178 = vmatpush.msra.mxu0 0.0
    %179 = vmatpush.msra.mxu0 0.0
    %180 = vmatpush.msra.mxu0 0.0
    %181 = vmatpush.msra.mxu0 0.0
    %182 = vmatpush.msra.mxu0 0.0
    %183 = vmatpush.msra.mxu0 0.0
    %184 = vmatpush.msra.mxu0 0.0
    %185 = vmatpush.msra.mxu0 0.0
    %186 = vmatpush.msra.mxu0 0.0
    %187 = vmatpush.msra.mxu0 0.0
    %188 = vmatpush.msra.mxu0 %v93
    %189 = vmatpush.msra.mxu0 %v90
    %190 = vmatmul.f32.gmra.mxu0 %v105
    %v191 = vpop.f32.mrf.mxu0
    %v192 = vadd.f32 %v99, %v191
    %193 = vmatmul.f32.gmra.mxu0 %v108
    %v194 = vpop.f32.mrf.mxu0
    %v195 = vadd.f32 %v99, %v194
    %196 = vmatmul.f32.gmra.mxu0 %v111
    %v197 = vpop.f32.mrf.mxu0
    %v198 = vadd.f32 %v99, %v197
    %199 = vmatmul.f32.gmra.mxu0 %v114
    %v200 = vpop.f32.mrf.mxu0
    %v201 = vadd.f32 %v99, %v200
    %202 = vdwg.mxu0
    %v203 = vld [vmem:[#allocation3 + $0x61] ss:$0 sm:$0xff]
    %v204 = vld [vmem:[%s2] sm:$0xff]
    %v205 = vld [vmem:[%s2 + $0x8] sm:$0xf]
    %v206 = vld [vmem:[%s2 + $0xc] sm:$0xff]
    %v207 = vld [vmem:[%s2 + $0x14] sm:$0xf]
    %v208 = vld [vmem:[%s2 + $0x18] sm:$0xff]
    %v209 = vld [vmem:[%s2 + $0x20] sm:$0xf]
    %v216 = vunpack.c.l.b16 %v204
    %v217 = vunpack.c.h.b16 %v204
    %v218 = vunpack.c.l.b16 %v205
    %v219 = vunpack.c.l.b16 %v206
    %v220 = vunpack.c.h.b16 %v206
    %v221 = vunpack.c.l.b16 %v207
    %v222 = vunpack.c.l.b16 %v208
    %v223 = vunpack.c.h.b16 %v208
    %v224 = vunpack.c.l.b16 %v209
    %v225 = vpack.c.b16 %v219, %v216
    %v226 = vpack.c.b16 %v220, %v217
    %v227 = vpack.c.b16 %v221, %v218
    %v228 = vpack.c.b16 %v222, %v222
    %v229 = vpack.c.b16 %v223, %v223
    %v230 = vpack.c.b16 %v224, %v224
    %vm234 = vcmask 195584
    %v236 = vsel %vm234, 0, 0
    %v239 = vsel %vm51, %v228, 0
    %v242 = vsel %vm51, %v229, 0
    %v245 = vsel %vm51, %v230, 0
    %247 = vmatpush.bf16.msra.mxu0 0
    %248 = vmatpush.bf16.msra.mxu0 0
    %249 = vmatpush.bf16.msra.mxu0 0
    %250 = vmatpush.bf16.msra.mxu0 0
    %251 = vmatpush.bf16.msra.mxu0 0
    %252 = vmatpush.bf16.msra.mxu0 0
    %253 = vmatpush.bf16.msra.mxu0 %v239
    %254 = vmatpush.bf16.msra.mxu0 %v225
    %255 = vmatmul.bf16.gmra.mxu0 %v236
    %v256 = vpop.f32.mrf.mxu0
    %v257 = vadd.f32 0.0, %v256
    %v258 = vpop.f32.mrf.mxu0
    %259 = vdwg.mxu0
    %260 = vmatpush.bf16.msra.mxu0 0
    %261 = vmatpush.bf16.msra.mxu0 0
    %262 = vmatpush.bf16.msra.mxu0 0
    %263 = vmatpush.bf16.msra.mxu0 0
    %264 = vmatpush.bf16.msra.mxu0 0
    %265 = vmatpush.bf16.msra.mxu0 0
    %266 = vmatpush.bf16.msra.mxu0 %v242
    %267 = vmatpush.bf16.msra.mxu0 %v226
    %268 = vmatmul.bf16.gmra.mxu0 %v236
    %v269 = vpop.f32.mrf.mxu0
    %v270 = vadd.f32 0.0, %v269
    %v271 = vpop.f32.mrf.mxu0
    %272 = vdwg.mxu0
    %273 = vmatpush.bf16.msra.mxu0 0
    %274 = vmatpush.bf16.msra.mxu0 0
    %275 = vmatpush.bf16.msra.mxu0 0
    %276 = vmatpush.bf16.msra.mxu0 0
    %277 = vmatpush.bf16.msra.mxu0 0
    %278 = vmatpush.bf16.msra.mxu0 0
    %279 = vmatpush.bf16.msra.mxu0 %v245
    %280 = vmatpush.bf16.msra.mxu0 %v227
    %281 = vmatmul.bf16.gmra.mxu0 %v236
    %v282 = vpop.f32.mrf.mxu0
    %v283 = vadd.f32 0.0, %v282
    %v284 = vpop.f32.mrf.mxu0
    %285 = vdwg.mxu0
    %v286 = vadd.f32 %v134, %v257
    %v287 = vxor.u32 %v286, 2147483648
    %v288 = vmul.f32 %v287, 1.442695
    %v289 = vpow.pop %v288
    %v290 = vadd.f32 %v289, 1.0
    %v291 = vrcp.pop %v290
    %v292 = vmul.f32 %v290, %v291
    %v293 = vsub.f32 1.0, %v292
    %v294 = vmul.f32 %v291, %v293
    %v295 = vadd.f32 %v291, %v294
    %vm296 = vweird.f32 %v290
    %vm297 = vweird.f32 %v291
    %vm298 = vmor %vm296, %vm297
    %v299 = vsel %vm298, %v291, %v295
    %v300 = vand.u32 2147483647, %v290
    %vm301 = vcmp.eq.f32.partialorder %v300, 8.507059e+37
    %v302 = vand.u32 %v290, 2147483648
    %v303 = vor.u32 1.1754944e-38, %v302
    %v304 = vsel %vm301, %v303, %v299
    %v305 = vmul.f32 1.0, %v304
    %v306 = vadd.f32 %v163, %v270
    %v307 = vxor.u32 %v306, 2147483648
    %v308 = vmul.f32 %v307, 1.442695
    %v309 = vpow.pop %v308
    %v310 = vadd.f32 %v309, 1.0
    %v311 = vrcp.pop %v310
    %v312 = vmul.f32 %v310, %v311
    %v313 = vsub.f32 1.0, %v312
    %v314 = vmul.f32 %v311, %v313
    %v315 = vadd.f32 %v311, %v314
    %vm316 = vweird.f32 %v310
    %vm317 = vweird.f32 %v311
    %vm318 = vmor %vm316, %vm317
    %v319 = vsel %vm318, %v311, %v315
    %v320 = vand.u32 2147483647, %v310
    %vm321 = vcmp.eq.f32.partialorder %v320, 8.507059e+37
    %v322 = vand.u32 %v310, 2147483648
    %v323 = vor.u32 1.1754944e-38, %v322
    %v324 = vsel %vm321, %v323, %v319
    %v325 = vmul.f32 1.0, %v324
    %v326 = vadd.f32 %v283, %v203
    %v327 = vmul.f32 %v305, %v326
    %v328 = vadd.f32 %v192, %v327
    %v329 = vtanh.pop %v328
    %v330 = vsub.f32 1.0, %v325
    %v331 = vmul.f32 %v330, %v329
    %v332 = vmul.f32 %v325, 0.0
    %v333 = vadd.f32 %v331, %v332
    %vm334 = vcmask 189440
    %335 = vst.msk [vmem:[#allocation2] sm:$0x3] %vm334, %v333
    %v336 = vpack.c.bf16 %v333, %v333
    %v338 = vsel %vm234, %v336, 0
    %340 = vmatpush.bf16.msra.mxu0 0
    %341 = vmatpush.bf16.msra.mxu0 0
    %342 = vmatpush.bf16.msra.mxu0 0
    %343 = vmatpush.bf16.msra.mxu0 0
    %344 = vmatpush.bf16.msra.mxu0 0
    %345 = vmatpush.bf16.msra.mxu0 0
    %346 = vmatpush.bf16.msra.mxu0 %v239
    %347 = vmatpush.bf16.msra.mxu0 %v225
    %348 = vmatmul.bf16.gmra.mxu0 %v338
    %v349 = vpop.f32.mrf.mxu0
    %v350 = vadd.f32 0.0, %v349
    %v351 = vpop.f32.mrf.mxu0
    %352 = vdwg.mxu0
    %353 = vmatpush.bf16.msra.mxu0 0
    %354 = vmatpush.bf16.msra.mxu0 0
    %355 = vmatpush.bf16.msra.mxu0 0
    %356 = vmatpush.bf16.msra.mxu0 0
    %357 = vmatpush.bf16.msra.mxu0 0
    %358 = vmatpush.bf16.msra.mxu0 0
    %359 = vmatpush.bf16.msra.mxu0 %v242
    %360 = vmatpush.bf16.msra.mxu0 %v226
    %361 = vmatmul.bf16.gmra.mxu0 %v338
    %v362 = vpop.f32.mrf.mxu0
    %v363 = vadd.f32 0.0, %v362
    %v364 = vpop.f32.mrf.mxu0
    %365 = vdwg.mxu0
    %366 = vmatpush.bf16.msra.mxu0 0
    %367 = vmatpush.bf16.msra.mxu0 0
    %368 = vmatpush.bf16.msra.mxu0 0
    %369 = vmatpush.bf16.msra.mxu0 0
    %370 = vmatpush.bf16.msra.mxu0 0
    %371 = vmatpush.bf16.msra.mxu0 0
    %372 = vmatpush.bf16.msra.mxu0 %v245
    %373 = vmatpush.bf16.msra.mxu0 %v227
    %374 = vmatmul.bf16.gmra.mxu0 %v338
    %v375 = vpop.f32.mrf.mxu0
    %v376 = vadd.f32 0.0, %v375
    %v377 = vpop.f32.mrf.mxu0
    %378 = vdwg.mxu0
    %v380 = vrot.slane %v350, 6
    %v382 = vadd.f32 %v134, %v380
    %v383 = vxor.u32 %v382, 2147483648
    %v384 = vmul.f32 %v383, 1.442695
    %v385 = vpow.pop %v384
    %v386 = vadd.f32 %v385, 1.0
    %v387 = vrcp.pop %v386
    %v388 = vmul.f32 %v386, %v387
    %v389 = vsub.f32 1.0, %v388
    %v390 = vmul.f32 %v387, %v389
    %v391 = vadd.f32 %v387, %v390
    %vm392 = vweird.f32 %v386
    %vm393 = vweird.f32 %v387
    %vm394 = vmor %vm392, %vm393
    %v395 = vsel %vm394, %v387, %v391
    %v396 = vand.u32 2147483647, %v386
    %vm397 = vcmp.eq.f32.partialorder %v396, 8.507059e+37
    %v398 = vand.u32 %v386, 2147483648
    %v399 = vor.u32 1.1754944e-38, %v398
    %v400 = vsel %vm397, %v399, %v395
    %v401 = vmul.f32 1.0, %v400
    %v403 = vrot.slane %v363, 6
    %v405 = vadd.f32 %v163, %v403
    %v406 = vxor.u32 %v405, 2147483648
    %v407 = vmul.f32 %v406, 1.442695
    %v408 = vpow.pop %v407
    %v409 = vadd.f32 %v408, 1.0
    %v410 = vrcp.pop %v409
    %v411 = vmul.f32 %v409, %v410
    %v412 = vsub.f32 1.0, %v411
    %v413 = vmul.f32 %v410, %v412
    %v414 = vadd.f32 %v410, %v413
    %vm415 = vweird.f32 %v409
    %vm416 = vweird.f32 %v410
    %vm417 = vmor %vm415, %vm416
    %v418 = vsel %vm417, %v410, %v414
    %v419 = vand.u32 2147483647, %v409
    %vm420 = vcmp.eq.f32.partialorder %v419, 8.507059e+37
    %v421 = vand.u32 %v409, 2147483648
    %v422 = vor.u32 1.1754944e-38, %v421
    %v423 = vsel %vm420, %v422, %v418
    %v424 = vmul.f32 1.0, %v423
    %v425 = vadd.f32 %v376, %v203
    %v427 = vrot.slane %v425, 6
    %v429 = vmul.f32 %v401, %v427
    %v430 = vadd.f32 %v192, %v429
    %v431 = vtanh.pop %v430
    %v432 = vsub.f32 1.0, %v424
    %v433 = vmul.f32 %v432, %v431
    %v435 = vrot.slane %v333, 6
    %v437 = vmul.f32 %v424, %v435
    %v438 = vadd.f32 %v433, %v437
    %vm439 = vcmask 191490
    %440 = vst.msk [vmem:[#allocation2] sm:$0xc] %vm439, %v438
    %v441 = vpack.c.bf16 %v438, %v438
    %v443 = vrot.slane %v441, 1
    %v445 = vsel %vm234, %v443, 0
    %447 = vmatpush.bf16.msra.mxu0 0
    %448 = vmatpush.bf16.msra.mxu0 0
    %449 = vmatpush.bf16.msra.mxu0 0
    %450 = vmatpush.bf16.msra.mxu0 0
    %451 = vmatpush.bf16.msra.mxu0 0
    %452 = vmatpush.bf16.msra.mxu0 0
    %453 = vmatpush.bf16.msra.mxu0 %v239
    %454 = vmatpush.bf16.msra.mxu0 %v225
    %455 = vmatmul.bf16.gmra.mxu0 %v445
    %v456 = vpop.f32.mrf.mxu0
    %v457 = vadd.f32 0.0, %v456
    %v458 = vpop.f32.mrf.mxu0
    %459 = vdwg.mxu0
    %460 = vmatpush.bf16.msra.mxu0 0
    %461 = vmatpush.bf16.msra.mxu0 0
    %462 = vmatpush.bf16.msra.mxu0 0
    %463 = vmatpush.bf16.msra.mxu0 0
    %464 = vmatpush.bf16.msra.mxu0 0
    %465 = vmatpush.bf16.msra.mxu0 0
    %466 = vmatpush.bf16.msra.mxu0 %v242
    %467 = vmatpush.bf16.msra.mxu0 %v226
    %468 = vmatmul.bf16.gmra.mxu0 %v445
    %v469 = vpop.f32.mrf.mxu0
    %v470 = vadd.f32 0.0, %v469
    %v471 = vpop.f32.mrf.mxu0
    %472 = vdwg.mxu0
    %473 = vmatpush.bf16.msra.mxu0 0
    %474 = vmatpush.bf16.msra.mxu0 0
    %475 = vmatpush.bf16.msra.mxu0 0
    %476 = vmatpush.bf16.msra.mxu0 0
    %477 = vmatpush.bf16.msra.mxu0 0
    %478 = vmatpush.bf16.msra.mxu0 0
    %479 = vmatpush.bf16.msra.mxu0 %v245
    %480 = vmatpush.bf16.msra.mxu0 %v227
    %481 = vmatmul.bf16.gmra.mxu0 %v445
    %v482 = vpop.f32.mrf.mxu0
    %v483 = vadd.f32 0.0, %v482
    %v484 = vpop.f32.mrf.mxu0
    %485 = vdwg.mxu0
    %v487 = vrot.slane %v457, 4
    %v489 = vadd.f32 %v134, %v487
    %v490 = vxor.u32 %v489, 2147483648
    %v491 = vmul.f32 %v490, 1.442695
    %v492 = vpow.pop %v491
    %v493 = vadd.f32 %v492, 1.0
    %v494 = vrcp.pop %v493
    %v495 = vmul.f32 %v493, %v494
    %v496 = vsub.f32 1.0, %v495
    %v497 = vmul.f32 %v494, %v496
    %v498 = vadd.f32 %v494, %v497
    %vm499 = vweird.f32 %v493
    %vm500 = vweird.f32 %v494
    %vm501 = vmor %vm499, %vm500
    %v502 = vsel %vm501, %v494, %v498
    %v503 = vand.u32 2147483647, %v493
    %vm504 = vcmp.eq.f32.partialorder %v503, 8.507059e+37
    %v505 = vand.u32 %v493, 2147483648
    %v506 = vor.u32 1.1754944e-38, %v505
    %v507 = vsel %vm504, %v506, %v502
    %v508 = vmul.f32 1.0, %v507
    %v510 = vrot.slane %v470, 4
    %v512 = vadd.f32 %v163, %v510
    %v513 = vxor.u32 %v512, 2147483648
    %v514 = vmul.f32 %v513, 1.442695
    %v515 = vpow.pop %v514
    %v516 = vadd.f32 %v515, 1.0
    %v517 = vrcp.pop %v516
    %v518 = vmul.f32 %v516, %v517
    %v519 = vsub.f32 1.0, %v518
    %v520 = vmul.f32 %v517, %v519
    %v521 = vadd.f32 %v517, %v520
    %vm522 = vweird.f32 %v516
    %vm523 = vweird.f32 %v517
    %vm524 = vmor %vm522, %vm523
    %v525 = vsel %vm524, %v517, %v521
    %v526 = vand.u32 2147483647, %v516
    %vm527 = vcmp.eq.f32.partialorder %v526, 8.507059e+37
    %v528 = vand.u32 %v516, 2147483648
    %v529 = vor.u32 1.1754944e-38, %v528
    %v530 = vsel %vm527, %v529, %v525
    %v531 = vmul.f32 1.0, %v530
    %v532 = vadd.f32 %v483, %v203
    %v534 = vrot.slane %v532, 4
    %v536 = vmul.f32 %v508, %v534
    %v537 = vadd.f32 %v192, %v536
    %v538 = vtanh.pop %v537
    %v539 = vsub.f32 1.0, %v531
    %v540 = vmul.f32 %v539, %v538
    %v542 = vrot.slane %v438, 6
    %v544 = vmul.f32 %v531, %v542
    %v545 = vadd.f32 %v540, %v544
    %vm546 = vcmask 193540
    %547 = vst.msk [vmem:[#allocation2] sm:$0x30] %vm546, %v545
    %v548 = vpack.c.bf16 %v545, %v545
    %v550 = vrot.slane %v548, 2
    %v552 = vsel %vm234, %v550, 0
    %554 = vmatpush.bf16.msra.mxu0 0
    %555 = vmatpush.bf16.msra.mxu0 0
    %556 = vmatpush.bf16.msra.mxu0 0
    %557 = vmatpush.bf16.msra.mxu0 0
    %558 = vmatpush.bf16.msra.mxu0 0
    %559 = vmatpush.bf16.msra.mxu0 0
    %560 = vmatpush.bf16.msra.mxu0 %v239
    %561 = vmatpush.bf16.msra.mxu0 %v225
    %562 = vmatmul.bf16.gmra.mxu0 %v552
    %v563 = vpop.f32.mrf.mxu0
    %v564 = vadd.f32 0.0, %v563
    %v565 = vpop.f32.mrf.mxu0
    %566 = vdwg.mxu0
    %567 = vmatpush.bf16.msra.mxu0 0
    %568 = vmatpush.bf16.msra.mxu0 0
    %569 = vmatpush.bf16.msra.mxu0 0
    %570 = vmatpush.bf16.msra.mxu0 0
    %571 = vmatpush.bf16.msra.mxu0 0
    %572 = vmatpush.bf16.msra.mxu0 0
    %573 = vmatpush.bf16.msra.mxu0 %v242
    %574 = vmatpush.bf16.msra.mxu0 %v226
    %575 = vmatmul.bf16.gmra.mxu0 %v552
    %v576 = vpop.f32.mrf.mxu0
    %v577 = vadd.f32 0.0, %v576
    %v578 = vpop.f32.mrf.mxu0
    %579 = vdwg.mxu0
    %580 = vmatpush.bf16.msra.mxu0 0
    %581 = vmatpush.bf16.msra.mxu0 0
    %582 = vmatpush.bf16.msra.mxu0 0
    %583 = vmatpush.bf16.msra.mxu0 0
    %584 = vmatpush.bf16.msra.mxu0 0
    %585 = vmatpush.bf16.msra.mxu0 0
    %586 = vmatpush.bf16.msra.mxu0 %v245
    %587 = vmatpush.bf16.msra.mxu0 %v227
    %588 = vmatmul.bf16.gmra.mxu0 %v552
    %v589 = vpop.f32.mrf.mxu0
    %v590 = vadd.f32 0.0, %v589
    %v591 = vpop.f32.mrf.mxu0
    %592 = vdwg.mxu0
    %v594 = vrot.slane %v564, 2
    %v596 = vadd.f32 %v134, %v594
    %v597 = vxor.u32 %v596, 2147483648
    %v598 = vmul.f32 %v597, 1.442695
    %v599 = vpow.pop %v598
    %v600 = vadd.f32 %v599, 1.0
    %v601 = vrcp.pop %v600
    %v602 = vmul.f32 %v600, %v601
    %v603 = vsub.f32 1.0, %v602
    %v604 = vmul.f32 %v601, %v603
    %v605 = vadd.f32 %v601, %v604
    %vm606 = vweird.f32 %v600
    %vm607 = vweird.f32 %v601
    %vm608 = vmor %vm606, %vm607
    %v609 = vsel %vm608, %v601, %v605
    %v610 = vand.u32 2147483647, %v600
    %vm611 = vcmp.eq.f32.partialorder %v610, 8.507059e+37
    %v612 = vand.u32 %v600, 2147483648
    %v613 = vor.u32 1.1754944e-38, %v612
    %v614 = vsel %vm611, %v613, %v609
    %v615 = vmul.f32 1.0, %v614
    %v617 = vrot.slane %v577, 2
    %v619 = vadd.f32 %v163, %v617
    %v620 = vxor.u32 %v619, 2147483648
    %v621 = vmul.f32 %v620, 1.442695
    %v622 = vpow.pop %v621
    %v623 = vadd.f32 %v622, 1.0
    %v624 = vrcp.pop %v623
    %v625 = vmul.f32 %v623, %v624
    %v626 = vsub.f32 1.0, %v625
    %v627 = vmul.f32 %v624, %v626
    %v628 = vadd.f32 %v624, %v627
    %vm629 = vweird.f32 %v623
    %vm630 = vweird.f32 %v624
    %vm631 = vmor %vm629, %vm630
    %v632 = vsel %vm631, %v624, %v628
    %v633 = vand.u32 2147483647, %v623
    %vm634 = vcmp.eq.f32.partialorder %v633, 8.507059e+37
    %v635 = vand.u32 %v623, 2147483648
    %v636 = vor.u32 1.1754944e-38, %v635
    %v637 = vsel %vm634, %v636, %v632
    %v638 = vmul.f32 1.0, %v637
    %v639 = vadd.f32 %v590, %v203
    %v641 = vrot.slane %v639, 2
    %v643 = vmul.f32 %v615, %v641
    %v644 = vadd.f32 %v192, %v643
    %v645 = vtanh.pop %v644
    %v646 = vsub.f32 1.0, %v638
    %v647 = vmul.f32 %v646, %v645
    %v649 = vrot.slane %v545, 6
    %v651 = vmul.f32 %v638, %v649
    %v652 = vadd.f32 %v647, %v651
    %vm653 = vcmask 195590
    %654 = vst.msk [vmem:[#allocation2] sm:$0xc0] %vm653, %v652
    %v655 = vpack.c.bf16 %v652, %v652
    %v657 = vrot.slane %v655, 3
    %v659 = vsel %vm234, %v657, 0
    %661 = vmatpush.bf16.msra.mxu0 0
    %662 = vmatpush.bf16.msra.mxu0 0
    %663 = vmatpush.bf16.msra.mxu0 0
    %664 = vmatpush.bf16.msra.mxu0 0
    %665 = vmatpush.bf16.msra.mxu0 0
    %666 = vmatpush.bf16.msra.mxu0 0
    %667 = vmatpush.bf16.msra.mxu0 %v239
    %668 = vmatpush.bf16.msra.mxu0 %v225
    %669 = vmatmul.bf16.gmra.mxu0 %v659
    %v670 = vpop.f32.mrf.mxu0
    %v671 = vadd.f32 0.0, %v670
    %v672 = vpop.f32.mrf.mxu0
    %673 = vdwg.mxu0
    %674 = vmatpush.bf16.msra.mxu0 0
    %675 = vmatpush.bf16.msra.mxu0 0
    %676 = vmatpush.bf16.msra.mxu0 0
    %677 = vmatpush.bf16.msra.mxu0 0
    %678 = vmatpush.bf16.msra.mxu0 0
    %679 = vmatpush.bf16.msra.mxu0 0
    %680 = vmatpush.bf16.msra.mxu0 %v242
    %681 = vmatpush.bf16.msra.mxu0 %v226
    %682 = vmatmul.bf16.gmra.mxu0 %v659
    %v683 = vpop.f32.mrf.mxu0
    %v684 = vadd.f32 0.0, %v683
    %v685 = vpop.f32.mrf.mxu0
    %686 = vdwg.mxu0
    %687 = vmatpush.bf16.msra.mxu0 0
    %688 = vmatpush.bf16.msra.mxu0 0
    %689 = vmatpush.bf16.msra.mxu0 0
    %690 = vmatpush.bf16.msra.mxu0 0
    %691 = vmatpush.bf16.msra.mxu0 0
    %692 = vmatpush.bf16.msra.mxu0 0
    %693 = vmatpush.bf16.msra.mxu0 %v245
    %694 = vmatpush.bf16.msra.mxu0 %v227
    %695 = vmatmul.bf16.gmra.mxu0 %v659
    %v696 = vpop.f32.mrf.mxu0
    %v697 = vadd.f32 0.0, %v696
    %v698 = vpop.f32.mrf.mxu0
    %699 = vdwg.mxu0
    %v700 = vadd.f32 %v137, %v671
    %v701 = vxor.u32 %v700, 2147483648
    %v702 = vmul.f32 %v701, 1.442695
    %v703 = vpow.pop %v702
    %v704 = vadd.f32 %v703, 1.0
    %v705 = vrcp.pop %v704
    %v706 = vmul.f32 %v704, %v705
    %v707 = vsub.f32 1.0, %v706
    %v708 = vmul.f32 %v705, %v707
    %v709 = vadd.f32 %v705, %v708
    %vm710 = vweird.f32 %v704
    %vm711 = vweird.f32 %v705
    %vm712 = vmor %vm710, %vm711
    %v713 = vsel %vm712, %v705, %v709
    %v714 = vand.u32 2147483647, %v704
    %vm715 = vcmp.eq.f32.partialorder %v714, 8.507059e+37
    %v716 = vand.u32 %v704, 2147483648
    %v717 = vor.u32 1.1754944e-38, %v716
    %v718 = vsel %vm715, %v717, %v713
    %v719 = vmul.f32 1.0, %v718
    %v720 = vadd.f32 %v166, %v684
    %v721 = vxor.u32 %v720, 2147483648
    %v722 = vmul.f32 %v721, 1.442695
    %v723 = vpow.pop %v722
    %v724 = vadd.f32 %v723, 1.0
    %v725 = vrcp.pop %v724
    %v726 = vmul.f32 %v724, %v725
    %v727 = vsub.f32 1.0, %v726
    %v728 = vmul.f32 %v725, %v727
    %v729 = vadd.f32 %v725, %v728
    %vm730 = vweird.f32 %v724
    %vm731 = vweird.f32 %v725
    %vm732 = vmor %vm730, %vm731
    %v733 = vsel %vm732, %v725, %v729
    %v734 = vand.u32 2147483647, %v724
    %vm735 = vcmp.eq.f32.partialorder %v734, 8.507059e+37
    %v736 = vand.u32 %v724, 2147483648
    %v737 = vor.u32 1.1754944e-38, %v736
    %v738 = vsel %vm735, %v737, %v733
    %v739 = vmul.f32 1.0, %v738
    %v740 = vadd.f32 %v697, %v203
    %v741 = vmul.f32 %v719, %v740
    %v742 = vadd.f32 %v195, %v741
    %v743 = vtanh.pop %v742
    %v744 = vsub.f32 1.0, %v739
    %v745 = vmul.f32 %v744, %v743
    %v747 = vrot.slane %v652, 6
    %v749 = vmul.f32 %v739, %v747
    %v750 = vadd.f32 %v745, %v749
    %751 = vst.msk [vmem:[#allocation2 + $0x8] sm:$0x3] %vm334, %v750
    %v752 = vpack.c.bf16 %v750, %v750
    %v754 = vsel %vm234, %v752, 0
    %756 = vmatpush.bf16.msra.mxu0 0
    %757 = vmatpush.bf16.msra.mxu0 0
    %758 = vmatpush.bf16.msra.mxu0 0
    %759 = vmatpush.bf16.msra.mxu0 0
    %760 = vmatpush.bf16.msra.mxu0 0
    %761 = vmatpush.bf16.msra.mxu0 0
    %762 = vmatpush.bf16.msra.mxu0 %v239
    %763 = vmatpush.bf16.msra.mxu0 %v225
    %764 = vmatmul.bf16.gmra.mxu0 %v754
    %v765 = vpop.f32.mrf.mxu0
    %v766 = vadd.f32 0.0, %v765
    %v767 = vpop.f32.mrf.mxu0
    %768 = vdwg.mxu0
    %769 = vmatpush.bf16.msra.mxu0 0
    %770 = vmatpush.bf16.msra.mxu0 0
    %771 = vmatpush.bf16.msra.mxu0 0
    %772 = vmatpush.bf16.msra.mxu0 0
    %773 = vmatpush.bf16.msra.mxu0 0
    %774 = vmatpush.bf16.msra.mxu0 0
    %775 = vmatpush.bf16.msra.mxu0 %v242
    %776 = vmatpush.bf16.msra.mxu0 %v226
    %777 = vmatmul.bf16.gmra.mxu0 %v754
    %v778 = vpop.f32.mrf.mxu0
    %v779 = vadd.f32 0.0, %v778
    %v780 = vpop.f32.mrf.mxu0
    %781 = vdwg.mxu0
    %782 = vmatpush.bf16.msra.mxu0 0
    %783 = vmatpush.bf16.msra.mxu0 0
    %784 = vmatpush.bf16.msra.mxu0 0
    %785 = vmatpush.bf16.msra.mxu0 0
    %786 = vmatpush.bf16.msra.mxu0 0
    %787 = vmatpush.bf16.msra.mxu0 0
    %788 = vmatpush.bf16.msra.mxu0 %v245
    %789 = vmatpush.bf16.msra.mxu0 %v227
    %790 = vmatmul.bf16.gmra.mxu0 %v754
    %v791 = vpop.f32.mrf.mxu0
    %v792 = vadd.f32 0.0, %v791
    %v793 = vpop.f32.mrf.mxu0
    %794 = vdwg.mxu0
    %v796 = vrot.slane %v766, 6
    %v798 = vadd.f32 %v137, %v796
    %v799 = vxor.u32 %v798, 2147483648
    %v800 = vmul.f32 %v799, 1.442695
    %v801 = vpow.pop %v800
    %v802 = vadd.f32 %v801, 1.0
    %v803 = vrcp.pop %v802
    %v804 = vmul.f32 %v802, %v803
    %v805 = vsub.f32 1.0, %v804
    %v806 = vmul.f32 %v803, %v805
    %v807 = vadd.f32 %v803, %v806
    %vm808 = vweird.f32 %v802
    %vm809 = vweird.f32 %v803
    %vm810 = vmor %vm808, %vm809
    %v811 = vsel %vm810, %v803, %v807
    %v812 = vand.u32 2147483647, %v802
    %vm813 = vcmp.eq.f32.partialorder %v812, 8.507059e+37
    %v814 = vand.u32 %v802, 2147483648
    %v815 = vor.u32 1.1754944e-38, %v814
    %v816 = vsel %vm813, %v815, %v811
    %v817 = vmul.f32 1.0, %v816
    %v819 = vrot.slane %v779, 6
    %v821 = vadd.f32 %v166, %v819
    %v822 = vxor.u32 %v821, 2147483648
    %v823 = vmul.f32 %v822, 1.442695
    %v824 = vpow.pop %v823
    %v825 = vadd.f32 %v824, 1.0
    %v826 = vrcp.pop %v825
    %v827 = vmul.f32 %v825, %v826
    %v828 = vsub.f32 1.0, %v827
    %v829 = vmul.f32 %v826, %v828
    %v830 = vadd.f32 %v826, %v829
    %vm831 = vweird.f32 %v825
    %vm832 = vweird.f32 %v826
    %vm833 = vmor %vm831, %vm832
    %v834 = vsel %vm833, %v826, %v830
    %v835 = vand.u32 2147483647, %v825
    %vm836 = vcmp.eq.f32.partialorder %v835, 8.507059e+37
    %v837 = vand.u32 %v825, 2147483648
    %v838 = vor.u32 1.1754944e-38, %v837
    %v839 = vsel %vm836, %v838, %v834
    %v840 = vmul.f32 1.0, %v839
    %v841 = vadd.f32 %v792, %v203
    %v843 = vrot.slane %v841, 6
    %v845 = vmul.f32 %v817, %v843
    %v846 = vadd.f32 %v195, %v845
    %v847 = vtanh.pop %v846
    %v848 = vsub.f32 1.0, %v840
    %v849 = vmul.f32 %v848, %v847
    %v851 = vrot.slane %v750, 6
    %v853 = vmul.f32 %v840, %v851
    %v854 = vadd.f32 %v849, %v853
    %855 = vst.msk [vmem:[#allocation2 + $0x8] sm:$0xc] %vm439, %v854
    %v856 = vpack.c.bf16 %v854, %v854
    %v858 = vrot.slane %v856, 1
    %v860 = vsel %vm234, %v858, 0
    %862 = vmatpush.bf16.msra.mxu0 0
    %863 = vmatpush.bf16.msra.mxu0 0
    %864 = vmatpush.bf16.msra.mxu0 0
    %865 = vmatpush.bf16.msra.mxu0 0
    %866 = vmatpush.bf16.msra.mxu0 0
    %867 = vmatpush.bf16.msra.mxu0 0
    %868 = vmatpush.bf16.msra.mxu0 %v239
    %869 = vmatpush.bf16.msra.mxu0 %v225
    %870 = vmatmul.bf16.gmra.mxu0 %v860
    %v871 = vpop.f32.mrf.mxu0
    %v872 = vadd.f32 0.0, %v871
    %v873 = vpop.f32.mrf.mxu0
    %874 = vdwg.mxu0
    %875 = vmatpush.bf16.msra.mxu0 0
    %876 = vmatpush.bf16.msra.mxu0 0
    %877 = vmatpush.bf16.msra.mxu0 0
    %878 = vmatpush.bf16.msra.mxu0 0
    %879 = vmatpush.bf16.msra.mxu0 0
    %880 = vmatpush.bf16.msra.mxu0 0
    %881 = vmatpush.bf16.msra.mxu0 %v242
    %882 = vmatpush.bf16.msra.mxu0 %v226
    %883 = vmatmul.bf16.gmra.mxu0 %v860
    %v884 = vpop.f32.mrf.mxu0
    %v885 = vadd.f32 0.0, %v884
    %v886 = vpop.f32.mrf.mxu0
    %887 = vdwg.mxu0
    %888 = vmatpush.bf16.msra.mxu0 0
    %889 = vmatpush.bf16.msra.mxu0 0
    %890 = vmatpush.bf16.msra.mxu0 0
    %891 = vmatpush.bf16.msra.mxu0 0
    %892 = vmatpush.bf16.msra.mxu0 0
    %893 = vmatpush.bf16.msra.mxu0 0
    %894 = vmatpush.bf16.msra.mxu0 %v245
    %895 = vmatpush.bf16.msra.mxu0 %v227
    %896 = vmatmul.bf16.gmra.mxu0 %v860
    %v897 = vpop.f32.mrf.mxu0
    %v898 = vadd.f32 0.0, %v897
    %v899 = vpop.f32.mrf.mxu0
    %900 = vdwg.mxu0
    %v902 = vrot.slane %v872, 4
    %v904 = vadd.f32 %v137, %v902
    %v905 = vxor.u32 %v904, 2147483648
    %v906 = vmul.f32 %v905, 1.442695
    %v907 = vpow.pop %v906
    %v908 = vadd.f32 %v907, 1.0
    %v909 = vrcp.pop %v908
    %v910 = vmul.f32 %v908, %v909
    %v911 = vsub.f32 1.0, %v910
    %v912 = vmul.f32 %v909, %v911
    %v913 = vadd.f32 %v909, %v912
    %vm914 = vweird.f32 %v908
    %vm915 = vweird.f32 %v909
    %vm916 = vmor %vm914, %vm915
    %v917 = vsel %vm916, %v909, %v913
    %v918 = vand.u32 2147483647, %v908
    %vm919 = vcmp.eq.f32.partialorder %v918, 8.507059e+37
    %v920 = vand.u32 %v908, 2147483648
    %v921 = vor.u32 1.1754944e-38, %v920
    %v922 = vsel %vm919, %v921, %v917
    %v923 = vmul.f32 1.0, %v922
    %v925 = vrot.slane %v885, 4
    %v927 = vadd.f32 %v166, %v925
    %v928 = vxor.u32 %v927, 2147483648
    %v929 = vmul.f32 %v928, 1.442695
    %v930 = vpow.pop %v929
    %v931 = vadd.f32 %v930, 1.0
    %v932 = vrcp.pop %v931
    %v933 = vmul.f32 %v931, %v932
    %v934 = vsub.f32 1.0, %v933
    %v935 = vmul.f32 %v932, %v934
    %v936 = vadd.f32 %v932, %v935
    %vm937 = vweird.f32 %v931
    %vm938 = vweird.f32 %v932
    %vm939 = vmor %vm937, %vm938
    %v940 = vsel %vm939, %v932, %v936
    %v941 = vand.u32 2147483647, %v931
    %vm942 = vcmp.eq.f32.partialorder %v941, 8.507059e+37
    %v943 = vand.u32 %v931, 2147483648
    %v944 = vor.u32 1.1754944e-38, %v943
    %v945 = vsel %vm942, %v944, %v940
    %v946 = vmul.f32 1.0, %v945
    %v947 = vadd.f32 %v898, %v203
    %v949 = vrot.slane %v947, 4
    %v951 = vmul.f32 %v923, %v949
    %v952 = vadd.f32 %v195, %v951
    %v953 = vtanh.pop %v952
    %v954 = vsub.f32 1.0, %v946
    %v955 = vmul.f32 %v954, %v953
    %v957 = vrot.slane %v854, 6
    %v959 = vmul.f32 %v946, %v957
    %v960 = vadd.f32 %v955, %v959
    %961 = vst.msk [vmem:[#allocation2 + $0x8] sm:$0x30] %vm546, %v960
    %v962 = vpack.c.bf16 %v960, %v960
    %v964 = vrot.slane %v962, 2
    %v966 = vsel %vm234, %v964, 0
    %968 = vmatpush.bf16.msra.mxu0 0
    %969 = vmatpush.bf16.msra.mxu0 0
    %970 = vmatpush.bf16.msra.mxu0 0
    %971 = vmatpush.bf16.msra.mxu0 0
    %972 = vmatpush.bf16.msra.mxu0 0
    %973 = vmatpush.bf16.msra.mxu0 0
    %974 = vmatpush.bf16.msra.mxu0 %v239
    %975 = vmatpush.bf16.msra.mxu0 %v225
    %976 = vmatmul.bf16.gmra.mxu0 %v966
    %v977 = vpop.f32.mrf.mxu0
    %v978 = vadd.f32 0.0, %v977
    %v979 = vpop.f32.mrf.mxu0
    %980 = vdwg.mxu0
    %981 = vmatpush.bf16.msra.mxu0 0
    %982 = vmatpush.bf16.msra.mxu0 0
    %983 = vmatpush.bf16.msra.mxu0 0
    %984 = vmatpush.bf16.msra.mxu0 0
    %985 = vmatpush.bf16.msra.mxu0 0
    %986 = vmatpush.bf16.msra.mxu0 0
    %987 = vmatpush.bf16.msra.mxu0 %v242
    %988 = vmatpush.bf16.msra.mxu0 %v226
    %989 = vmatmul.bf16.gmra.mxu0 %v966
    %v990 = vpop.f32.mrf.mxu0
    %v991 = vadd.f32 0.0, %v990
    %v992 = vpop.f32.mrf.mxu0
    %993 = vdwg.mxu0
    %994 = vmatpush.bf16.msra.mxu0 0
    %995 = vmatpush.bf16.msra.mxu0 0
    %996 = vmatpush.bf16.msra.mxu0 0
    %997 = vmatpush.bf16.msra.mxu0 0
    %998 = vmatpush.bf16.msra.mxu0 0
    %999 = vmatpush.bf16.msra.mxu0 0
    %1000 = vmatpush.bf16.msra.mxu0 %v245
    %1001 = vmatpush.bf16.msra.mxu0 %v227
    %1002 = vmatmul.bf16.gmra.mxu0 %v966
    %v1003 = vpop.f32.mrf.mxu0
    %v1004 = vadd.f32 0.0, %v1003
    %v1005 = vpop.f32.mrf.mxu0
    %1006 = vdwg.mxu0
    %v1008 = vrot.slane %v978, 2
    %v1010 = vadd.f32 %v137, %v1008
    %v1011 = vxor.u32 %v1010, 2147483648
    %v1012 = vmul.f32 %v1011, 1.442695
    %v1013 = vpow.pop %v1012
    %v1014 = vadd.f32 %v1013, 1.0
    %v1015 = vrcp.pop %v1014
    %v1016 = vmul.f32 %v1014, %v1015
    %v1017 = vsub.f32 1.0, %v1016
    %v1018 = vmul.f32 %v1015, %v1017
    %v1019 = vadd.f32 %v1015, %v1018
    %vm1020 = vweird.f32 %v1014
    %vm1021 = vweird.f32 %v1015
    %vm1022 = vmor %vm1020, %vm1021
    %v1023 = vsel %vm1022, %v1015, %v1019
    %v1024 = vand.u32 2147483647, %v1014
    %vm1025 = vcmp.eq.f32.partialorder %v1024, 8.507059e+37
    %v1026 = vand.u32 %v1014, 2147483648
    %v1027 = vor.u32 1.1754944e-38, %v1026
    %v1028 = vsel %vm1025, %v1027, %v1023
    %v1029 = vmul.f32 1.0, %v1028
    %v1031 = vrot.slane %v991, 2
    %v1033 = vadd.f32 %v166, %v1031
    %v1034 = vxor.u32 %v1033, 2147483648
    %v1035 = vmul.f32 %v1034, 1.442695
    %v1036 = vpow.pop %v1035
    %v1037 = vadd.f32 %v1036, 1.0
    %v1038 = vrcp.pop %v1037
    %v1039 = vmul.f32 %v1037, %v1038
    %v1040 = vsub.f32 1.0, %v1039
    %v1041 = vmul.f32 %v1038, %v1040
    %v1042 = vadd.f32 %v1038, %v1041
    %vm1043 = vweird.f32 %v1037
    %vm1044 = vweird.f32 %v1038
    %vm1045 = vmor %vm1043, %vm1044
    %v1046 = vsel %vm1045, %v1038, %v1042
    %v1047 = vand.u32 2147483647, %v1037
    %vm1048 = vcmp.eq.f32.partialorder %v1047, 8.507059e+37
    %v1049 = vand.u32 %v1037, 2147483648
    %v1050 = vor.u32 1.1754944e-38, %v1049
    %v1051 = vsel %vm1048, %v1050, %v1046
    %v1052 = vmul.f32 1.0, %v1051
    %v1053 = vadd.f32 %v1004, %v203
    %v1055 = vrot.slane %v1053, 2
    %v1057 = vmul.f32 %v1029, %v1055
    %v1058 = vadd.f32 %v195, %v1057
    %v1059 = vtanh.pop %v1058
    %v1060 = vsub.f32 1.0, %v1052
    %v1061 = vmul.f32 %v1060, %v1059
    %v1063 = vrot.slane %v960, 6
    %v1065 = vmul.f32 %v1052, %v1063
    %v1066 = vadd.f32 %v1061, %v1065
    %1067 = vst.msk [vmem:[#allocation2 + $0x8] sm:$0xc0] %vm653, %v1066
    %v1068 = vpack.c.bf16 %v1066, %v1066
    %v1070 = vrot.slane %v1068, 3
    %v1072 = vsel %vm234, %v1070, 0
    %1074 = vmatpush.bf16.msra.mxu0 0
    %1075 = vmatpush.bf16.msra.mxu0 0
    %1076 = vmatpush.bf16.msra.mxu0 0
    %1077 = vmatpush.bf16.msra.mxu0 0
    %1078 = vmatpush.bf16.msra.mxu0 0
    %1079 = vmatpush.bf16.msra.mxu0 0
    %1080 = vmatpush.bf16.msra.mxu0 %v239
    %1081 = vmatpush.bf16.msra.mxu0 %v225
    %1082 = vmatmul.bf16.gmra.mxu0 %v1072
    %v1083 = vpop.f32.mrf.mxu0
    %v1084 = vadd.f32 0.0, %v1083
    %v1085 = vpop.f32.mrf.mxu0
    %1086 = vdwg.mxu0
    %1087 = vmatpush.bf16.msra.mxu0 0
    %1088 = vmatpush.bf16.msra.mxu0 0
    %1089 = vmatpush.bf16.msra.mxu0 0
    %1090 = vmatpush.bf16.msra.mxu0 0
    %1091 = vmatpush.bf16.msra.mxu0 0
    %1092 = vmatpush.bf16.msra.mxu0 0
    %1093 = vmatpush.bf16.msra.mxu0 %v242
    %1094 = vmatpush.bf16.msra.mxu0 %v226
    %1095 = vmatmul.bf16.gmra.mxu0 %v1072
    %v1096 = vpop.f32.mrf.mxu0
    %v1097 = vadd.f32 0.0, %v1096
    %v1098 = vpop.f32.mrf.mxu0
    %1099 = vdwg.mxu0
    %1100 = vmatpush.bf16.msra.mxu0 0
    %1101 = vmatpush.bf16.msra.mxu0 0
    %1102 = vmatpush.bf16.msra.mxu0 0
    %1103 = vmatpush.bf16.msra.mxu0 0
    %1104 = vmatpush.bf16.msra.mxu0 0
    %1105 = vmatpush.bf16.msra.mxu0 0
    %1106 = vmatpush.bf16.msra.mxu0 %v245
    %1107 = vmatpush.bf16.msra.mxu0 %v227
    %1108 = vmatmul.bf16.gmra.mxu0 %v1072
    %v1109 = vpop.f32.mrf.mxu0
    %v1110 = vadd.f32 0.0, %v1109
    %v1111 = vpop.f32.mrf.mxu0
    %1112 = vdwg.mxu0
    %v1113 = vadd.f32 %v140, %v1084
    %v1114 = vxor.u32 %v1113, 2147483648
    %v1115 = vmul.f32 %v1114, 1.442695
    %v1116 = vpow.pop %v1115
    %v1117 = vadd.f32 %v1116, 1.0
    %v1118 = vrcp.pop %v1117
    %v1119 = vmul.f32 %v1117, %v1118
    %v1120 = vsub.f32 1.0, %v1119
    %v1121 = vmul.f32 %v1118, %v1120
    %v1122 = vadd.f32 %v1118, %v1121
    %vm1123 = vweird.f32 %v1117
    %vm1124 = vweird.f32 %v1118
    %vm1125 = vmor %vm1123, %vm1124
    %v1126 = vsel %vm1125, %v1118, %v1122
    %v1127 = vand.u32 2147483647, %v1117
    %vm1128 = vcmp.eq.f32.partialorder %v1127, 8.507059e+37
    %v1129 = vand.u32 %v1117, 2147483648
    %v1130 = vor.u32 1.1754944e-38, %v1129
    %v1131 = vsel %vm1128, %v1130, %v1126
    %v1132 = vmul.f32 1.0, %v1131
    %v1133 = vadd.f32 %v169, %v1097
    %v1134 = vxor.u32 %v1133, 2147483648
    %v1135 = vmul.f32 %v1134, 1.442695
    %v1136 = vpow.pop %v1135
    %v1137 = vadd.f32 %v1136, 1.0
    %v1138 = vrcp.pop %v1137
    %v1139 = vmul.f32 %v1137, %v1138
    %v1140 = vsub.f32 1.0, %v1139
    %v1141 = vmul.f32 %v1138, %v1140
    %v1142 = vadd.f32 %v1138, %v1141
    %vm1143 = vweird.f32 %v1137
    %vm1144 = vweird.f32 %v1138
    %vm1145 = vmor %vm1143, %vm1144
    %v1146 = vsel %vm1145, %v1138, %v1142
    %v1147 = vand.u32 2147483647, %v1137
    %vm1148 = vcmp.eq.f32.partialorder %v1147, 8.507059e+37
    %v1149 = vand.u32 %v1137, 2147483648
    %v1150 = vor.u32 1.1754944e-38, %v1149
    %v1151 = vsel %vm1148, %v1150, %v1146
    %v1152 = vmul.f32 1.0, %v1151
    %v1153 = vadd.f32 %v1110, %v203
    %v1154 = vmul.f32 %v1132, %v1153
    %v1155 = vadd.f32 %v198, %v1154
    %v1156 = vtanh.pop %v1155
    %v1157 = vsub.f32 1.0, %v1152
    %v1158 = vmul.f32 %v1157, %v1156
    %v1160 = vrot.slane %v1066, 6
    %v1162 = vmul.f32 %v1152, %v1160
    %v1163 = vadd.f32 %v1158, %v1162
    %1164 = vst.msk [vmem:[#allocation2 + $0x10] sm:$0x3] %vm334, %v1163
    %v1165 = vpack.c.bf16 %v1163, %v1163
    %v1167 = vsel %vm234, %v1165, 0
    %1169 = vmatpush.bf16.msra.mxu0 0
    %1170 = vmatpush.bf16.msra.mxu0 0
    %1171 = vmatpush.bf16.msra.mxu0 0
    %1172 = vmatpush.bf16.msra.mxu0 0
    %1173 = vmatpush.bf16.msra.mxu0 0
    %1174 = vmatpush.bf16.msra.mxu0 0
    %1175 = vmatpush.bf16.msra.mxu0 %v239
    %1176 = vmatpush.bf16.msra.mxu0 %v225
    %1177 = vmatmul.bf16.gmra.mxu0 %v1167
    %v1178 = vpop.f32.mrf.mxu0
    %v1179 = vadd.f32 0.0, %v1178
    %v1180 = vpop.f32.mrf.mxu0
    %1181 = vdwg.mxu0
    %1182 = vmatpush.bf16.msra.mxu0 0
    %1183 = vmatpush.bf16.msra.mxu0 0
    %1184 = vmatpush.bf16.msra.mxu0 0
    %1185 = vmatpush.bf16.msra.mxu0 0
    %1186 = vmatpush.bf16.msra.mxu0 0
    %1187 = vmatpush.bf16.msra.mxu0 0
    %1188 = vmatpush.bf16.msra.mxu0 %v242
    %1189 = vmatpush.bf16.msra.mxu0 %v226
    %1190 = vmatmul.bf16.gmra.mxu0 %v1167
    %v1191 = vpop.f32.mrf.mxu0
    %v1192 = vadd.f32 0.0, %v1191
    %v1193 = vpop.f32.mrf.mxu0
    %1194 = vdwg.mxu0
    %1195 = vmatpush.bf16.msra.mxu0 0
    %1196 = vmatpush.bf16.msra.mxu0 0
    %1197 = vmatpush.bf16.msra.mxu0 0
    %1198 = vmatpush.bf16.msra.mxu0 0
    %1199 = vmatpush.bf16.msra.mxu0 0
    %1200 = vmatpush.bf16.msra.mxu0 0
    %1201 = vmatpush.bf16.msra.mxu0 %v245
    %1202 = vmatpush.bf16.msra.mxu0 %v227
    %1203 = vmatmul.bf16.gmra.mxu0 %v1167
    %v1204 = vpop.f32.mrf.mxu0
    %v1205 = vadd.f32 0.0, %v1204
    %v1206 = vpop.f32.mrf.mxu0
    %1207 = vdwg.mxu0
    %v1209 = vrot.slane %v1179, 6
    %v1211 = vadd.f32 %v140, %v1209
    %v1212 = vxor.u32 %v1211, 2147483648
    %v1213 = vmul.f32 %v1212, 1.442695
    %v1214 = vpow.pop %v1213
    %v1215 = vadd.f32 %v1214, 1.0
    %v1216 = vrcp.pop %v1215
    %v1217 = vmul.f32 %v1215, %v1216
    %v1218 = vsub.f32 1.0, %v1217
    %v1219 = vmul.f32 %v1216, %v1218
    %v1220 = vadd.f32 %v1216, %v1219
    %vm1221 = vweird.f32 %v1215
    %vm1222 = vweird.f32 %v1216
    %vm1223 = vmor %vm1221, %vm1222
    %v1224 = vsel %vm1223, %v1216, %v1220
    %v1225 = vand.u32 2147483647, %v1215
    %vm1226 = vcmp.eq.f32.partialorder %v1225, 8.507059e+37
    %v1227 = vand.u32 %v1215, 2147483648
    %v1228 = vor.u32 1.1754944e-38, %v1227
    %v1229 = vsel %vm1226, %v1228, %v1224
    %v1230 = vmul.f32 1.0, %v1229
    %v1232 = vrot.slane %v1192, 6
    %v1234 = vadd.f32 %v169, %v1232
    %v1235 = vxor.u32 %v1234, 2147483648
    %v1236 = vmul.f32 %v1235, 1.442695
    %v1237 = vpow.pop %v1236
    %v1238 = vadd.f32 %v1237, 1.0
    %v1239 = vrcp.pop %v1238
    %v1240 = vmul.f32 %v1238, %v1239
    %v1241 = vsub.f32 1.0, %v1240
    %v1242 = vmul.f32 %v1239, %v1241
    %v1243 = vadd.f32 %v1239, %v1242
    %vm1244 = vweird.f32 %v1238
    %vm1245 = vweird.f32 %v1239
    %vm1246 = vmor %vm1244, %vm1245
    %v1247 = vsel %vm1246, %v1239, %v1243
    %v1248 = vand.u32 2147483647, %v1238
    %vm1249 = vcmp.eq.f32.partialorder %v1248, 8.507059e+37
    %v1250 = vand.u32 %v1238, 2147483648
    %v1251 = vor.u32 1.1754944e-38, %v1250
    %v1252 = vsel %vm1249, %v1251, %v1247
    %v1253 = vmul.f32 1.0, %v1252
    %v1254 = vadd.f32 %v1205, %v203
    %v1256 = vrot.slane %v1254, 6
    %v1258 = vmul.f32 %v1230, %v1256
    %v1259 = vadd.f32 %v198, %v1258
    %v1260 = vtanh.pop %v1259
    %v1261 = vsub.f32 1.0, %v1253
    %v1262 = vmul.f32 %v1261, %v1260
    %v1264 = vrot.slane %v1163, 6
    %v1266 = vmul.f32 %v1253, %v1264
    %v1267 = vadd.f32 %v1262, %v1266
    %1268 = vst.msk [vmem:[#allocation2 + $0x10] sm:$0xc] %vm439, %v1267
    %v1269 = vpack.c.bf16 %v1267, %v1267
    %v1271 = vrot.slane %v1269, 1
    %v1273 = vsel %vm234, %v1271, 0
    %1275 = vmatpush.bf16.msra.mxu0 0
    %1276 = vmatpush.bf16.msra.mxu0 0
    %1277 = vmatpush.bf16.msra.mxu0 0
    %1278 = vmatpush.bf16.msra.mxu0 0
    %1279 = vmatpush.bf16.msra.mxu0 0
    %1280 = vmatpush.bf16.msra.mxu0 0
    %1281 = vmatpush.bf16.msra.mxu0 %v239
    %1282 = vmatpush.bf16.msra.mxu0 %v225
    %1283 = vmatmul.bf16.gmra.mxu0 %v1273
    %v1284 = vpop.f32.mrf.mxu0
    %v1285 = vadd.f32 0.0, %v1284
    %v1286 = vpop.f32.mrf.mxu0
    %1287 = vdwg.mxu0
    %1288 = vmatpush.bf16.msra.mxu0 0
    %1289 = vmatpush.bf16.msra.mxu0 0
    %1290 = vmatpush.bf16.msra.mxu0 0
    %1291 = vmatpush.bf16.msra.mxu0 0
    %1292 = vmatpush.bf16.msra.mxu0 0
    %1293 = vmatpush.bf16.msra.mxu0 0
    %1294 = vmatpush.bf16.msra.mxu0 %v242
    %1295 = vmatpush.bf16.msra.mxu0 %v226
    %1296 = vmatmul.bf16.gmra.mxu0 %v1273
    %v1297 = vpop.f32.mrf.mxu0
    %v1298 = vadd.f32 0.0, %v1297
    %v1299 = vpop.f32.mrf.mxu0
    %1300 = vdwg.mxu0
    %1301 = vmatpush.bf16.msra.mxu0 0
    %1302 = vmatpush.bf16.msra.mxu0 0
    %1303 = vmatpush.bf16.msra.mxu0 0
    %1304 = vmatpush.bf16.msra.mxu0 0
    %1305 = vmatpush.bf16.msra.mxu0 0
    %1306 = vmatpush.bf16.msra.mxu0 0
    %1307 = vmatpush.bf16.msra.mxu0 %v245
    %1308 = vmatpush.bf16.msra.mxu0 %v227
    %1309 = vmatmul.bf16.gmra.mxu0 %v1273
    %v1310 = vpop.f32.mrf.mxu0
    %v1311 = vadd.f32 0.0, %v1310
    %v1312 = vpop.f32.mrf.mxu0
    %1313 = vdwg.mxu0
    %v1315 = vrot.slane %v1285, 4
    %v1317 = vadd.f32 %v140, %v1315
    %v1318 = vxor.u32 %v1317, 2147483648
    %v1319 = vmul.f32 %v1318, 1.442695
    %v1320 = vpow.pop %v1319
    %v1321 = vadd.f32 %v1320, 1.0
    %v1322 = vrcp.pop %v1321
    %v1323 = vmul.f32 %v1321, %v1322
    %v1324 = vsub.f32 1.0, %v1323
    %v1325 = vmul.f32 %v1322, %v1324
    %v1326 = vadd.f32 %v1322, %v1325
    %vm1327 = vweird.f32 %v1321
    %vm1328 = vweird.f32 %v1322
    %vm1329 = vmor %vm1327, %vm1328
    %v1330 = vsel %vm1329, %v1322, %v1326
    %v1331 = vand.u32 2147483647, %v1321
    %vm1332 = vcmp.eq.f32.partialorder %v1331, 8.507059e+37
    %v1333 = vand.u32 %v1321, 2147483648
    %v1334 = vor.u32 1.1754944e-38, %v1333
    %v1335 = vsel %vm1332, %v1334, %v1330
    %v1336 = vmul.f32 1.0, %v1335
    %v1338 = vrot.slane %v1298, 4
    %v1340 = vadd.f32 %v169, %v1338
    %v1341 = vxor.u32 %v1340, 2147483648
    %v1342 = vmul.f32 %v1341, 1.442695
    %v1343 = vpow.pop %v1342
    %v1344 = vadd.f32 %v1343, 1.0
    %v1345 = vrcp.pop %v1344
    %v1346 = vmul.f32 %v1344, %v1345
    %v1347 = vsub.f32 1.0, %v1346
    %v1348 = vmul.f32 %v1345, %v1347
    %v1349 = vadd.f32 %v1345, %v1348
    %vm1350 = vweird.f32 %v1344
    %vm1351 = vweird.f32 %v1345
    %vm1352 = vmor %vm1350, %vm1351
    %v1353 = vsel %vm1352, %v1345, %v1349
    %v1354 = vand.u32 2147483647, %v1344
    %vm1355 = vcmp.eq.f32.partialorder %v1354, 8.507059e+37
    %v1356 = vand.u32 %v1344, 2147483648
    %v1357 = vor.u32 1.1754944e-38, %v1356
    %v1358 = vsel %vm1355, %v1357, %v1353
    %v1359 = vmul.f32 1.0, %v1358
    %v1360 = vadd.f32 %v1311, %v203
    %v1362 = vrot.slane %v1360, 4
    %v1364 = vmul.f32 %v1336, %v1362
    %v1365 = vadd.f32 %v198, %v1364
    %v1366 = vtanh.pop %v1365
    %v1367 = vsub.f32 1.0, %v1359
    %v1368 = vmul.f32 %v1367, %v1366
    %v1370 = vrot.slane %v1267, 6
    %v1372 = vmul.f32 %v1359, %v1370
    %v1373 = vadd.f32 %v1368, %v1372
    %1374 = vst.msk [vmem:[#allocation2 + $0x10] sm:$0x30] %vm546, %v1373
    %v1375 = vpack.c.bf16 %v1373, %v1373
    %v1377 = vrot.slane %v1375, 2
    %v1379 = vsel %vm234, %v1377, 0
    %1381 = vmatpush.bf16.msra.mxu0 0
    %1382 = vmatpush.bf16.msra.mxu0 0
    %1383 = vmatpush.bf16.msra.mxu0 0
    %1384 = vmatpush.bf16.msra.mxu0 0
    %1385 = vmatpush.bf16.msra.mxu0 0
    %1386 = vmatpush.bf16.msra.mxu0 0
    %1387 = vmatpush.bf16.msra.mxu0 %v239
    %1388 = vmatpush.bf16.msra.mxu0 %v225
    %1389 = vmatmul.bf16.gmra.mxu0 %v1379
    %v1390 = vpop.f32.mrf.mxu0
    %v1391 = vadd.f32 0.0, %v1390
    %v1392 = vpop.f32.mrf.mxu0
    %1393 = vdwg.mxu0
    %1394 = vmatpush.bf16.msra.mxu0 0
    %1395 = vmatpush.bf16.msra.mxu0 0
    %1396 = vmatpush.bf16.msra.mxu0 0
    %1397 = vmatpush.bf16.msra.mxu0 0
    %1398 = vmatpush.bf16.msra.mxu0 0
    %1399 = vmatpush.bf16.msra.mxu0 0
    %1400 = vmatpush.bf16.msra.mxu0 %v242
    %1401 = vmatpush.bf16.msra.mxu0 %v226
    %1402 = vmatmul.bf16.gmra.mxu0 %v1379
    %v1403 = vpop.f32.mrf.mxu0
    %v1404 = vadd.f32 0.0, %v1403
    %v1405 = vpop.f32.mrf.mxu0
    %1406 = vdwg.mxu0
    %1407 = vmatpush.bf16.msra.mxu0 0
    %1408 = vmatpush.bf16.msra.mxu0 0
    %1409 = vmatpush.bf16.msra.mxu0 0
    %1410 = vmatpush.bf16.msra.mxu0 0
    %1411 = vmatpush.bf16.msra.mxu0 0
    %1412 = vmatpush.bf16.msra.mxu0 0
    %1413 = vmatpush.bf16.msra.mxu0 %v245
    %1414 = vmatpush.bf16.msra.mxu0 %v227
    %1415 = vmatmul.bf16.gmra.mxu0 %v1379
    %v1416 = vpop.f32.mrf.mxu0
    %v1417 = vadd.f32 0.0, %v1416
    %v1418 = vpop.f32.mrf.mxu0
    %1419 = vdwg.mxu0
    %v1421 = vrot.slane %v1391, 2
    %v1423 = vadd.f32 %v140, %v1421
    %v1424 = vxor.u32 %v1423, 2147483648
    %v1425 = vmul.f32 %v1424, 1.442695
    %v1426 = vpow.pop %v1425
    %v1427 = vadd.f32 %v1426, 1.0
    %v1428 = vrcp.pop %v1427
    %v1429 = vmul.f32 %v1427, %v1428
    %v1430 = vsub.f32 1.0, %v1429
    %v1431 = vmul.f32 %v1428, %v1430
    %v1432 = vadd.f32 %v1428, %v1431
    %vm1433 = vweird.f32 %v1427
    %vm1434 = vweird.f32 %v1428
    %vm1435 = vmor %vm1433, %vm1434
    %v1436 = vsel %vm1435, %v1428, %v1432
    %v1437 = vand.u32 2147483647, %v1427
    %vm1438 = vcmp.eq.f32.partialorder %v1437, 8.507059e+37
    %v1439 = vand.u32 %v1427, 2147483648
    %v1440 = vor.u32 1.1754944e-38, %v1439
    %v1441 = vsel %vm1438, %v1440, %v1436
    %v1442 = vmul.f32 1.0, %v1441
    %v1444 = vrot.slane %v1404, 2
    %v1446 = vadd.f32 %v169, %v1444
    %v1447 = vxor.u32 %v1446, 2147483648
    %v1448 = vmul.f32 %v1447, 1.442695
    %v1449 = vpow.pop %v1448
    %v1450 = vadd.f32 %v1449, 1.0
    %v1451 = vrcp.pop %v1450
    %v1452 = vmul.f32 %v1450, %v1451
    %v1453 = vsub.f32 1.0, %v1452
    %v1454 = vmul.f32 %v1451, %v1453
    %v1455 = vadd.f32 %v1451, %v1454
    %vm1456 = vweird.f32 %v1450
    %vm1457 = vweird.f32 %v1451
    %vm1458 = vmor %vm1456, %vm1457
    %v1459 = vsel %vm1458, %v1451, %v1455
    %v1460 = vand.u32 2147483647, %v1450
    %vm1461 = vcmp.eq.f32.partialorder %v1460, 8.507059e+37
    %v1462 = vand.u32 %v1450, 2147483648
    %v1463 = vor.u32 1.1754944e-38, %v1462
    %v1464 = vsel %vm1461, %v1463, %v1459
    %v1465 = vmul.f32 1.0, %v1464
    %v1466 = vadd.f32 %v1417, %v203
    %v1468 = vrot.slane %v1466, 2
    %v1470 = vmul.f32 %v1442, %v1468
    %v1471 = vadd.f32 %v198, %v1470
    %v1472 = vtanh.pop %v1471
    %v1473 = vsub.f32 1.0, %v1465
    %v1474 = vmul.f32 %v1473, %v1472
    %v1476 = vrot.slane %v1373, 6
    %v1478 = vmul.f32 %v1465, %v1476
    %v1479 = vadd.f32 %v1474, %v1478
    %1480 = vst.msk [vmem:[#allocation2 + $0x10] sm:$0xc0] %vm653, %v1479
    %v1481 = vpack.c.bf16 %v1479, %v1479
    %v1483 = vrot.slane %v1481, 3
    %v1485 = vsel %vm234, %v1483, 0
    %1487 = vmatpush.bf16.msra.mxu0 0
    %1488 = vmatpush.bf16.msra.mxu0 0
    %1489 = vmatpush.bf16.msra.mxu0 0
    %1490 = vmatpush.bf16.msra.mxu0 0
    %1491 = vmatpush.bf16.msra.mxu0 0
    %1492 = vmatpush.bf16.msra.mxu0 0
    %1493 = vmatpush.bf16.msra.mxu0 %v239
    %1494 = vmatpush.bf16.msra.mxu0 %v225
    %1495 = vmatmul.bf16.gmra.mxu0 %v1485
    %v1496 = vpop.f32.mrf.mxu0
    %v1497 = vadd.f32 0.0, %v1496
    %v1498 = vpop.f32.mrf.mxu0
    %1499 = vdwg.mxu0
    %1500 = vmatpush.bf16.msra.mxu0 0
    %1501 = vmatpush.bf16.msra.mxu0 0
    %1502 = vmatpush.bf16.msra.mxu0 0
    %1503 = vmatpush.bf16.msra.mxu0 0
    %1504 = vmatpush.bf16.msra.mxu0 0
    %1505 = vmatpush.bf16.msra.mxu0 0
    %1506 = vmatpush.bf16.msra.mxu0 %v242
    %1507 = vmatpush.bf16.msra.mxu0 %v226
    %1508 = vmatmul.bf16.gmra.mxu0 %v1485
    %v1509 = vpop.f32.mrf.mxu0
    %v1510 = vadd.f32 0.0, %v1509
    %v1511 = vpop.f32.mrf.mxu0
    %1512 = vdwg.mxu0
    %1513 = vmatpush.bf16.msra.mxu0 0
    %1514 = vmatpush.bf16.msra.mxu0 0
    %1515 = vmatpush.bf16.msra.mxu0 0
    %1516 = vmatpush.bf16.msra.mxu0 0
    %1517 = vmatpush.bf16.msra.mxu0 0
    %1518 = vmatpush.bf16.msra.mxu0 0
    %1519 = vmatpush.bf16.msra.mxu0 %v245
    %1520 = vmatpush.bf16.msra.mxu0 %v227
    %1521 = vmatmul.bf16.gmra.mxu0 %v1485
    %v1522 = vpop.f32.mrf.mxu0
    %v1523 = vadd.f32 0.0, %v1522
    %v1524 = vpop.f32.mrf.mxu0
    %1525 = vdwg.mxu0
    %v1526 = vadd.f32 %v143, %v1497
    %v1527 = vxor.u32 %v1526, 2147483648
    %v1528 = vmul.f32 %v1527, 1.442695
    %v1529 = vpow.pop %v1528
    %v1530 = vadd.f32 %v1529, 1.0
    %v1531 = vrcp.pop %v1530
    %v1532 = vmul.f32 %v1530, %v1531
    %v1533 = vsub.f32 1.0, %v1532
    %v1534 = vmul.f32 %v1531, %v1533
    %v1535 = vadd.f32 %v1531, %v1534
    %vm1536 = vweird.f32 %v1530
    %vm1537 = vweird.f32 %v1531
    %vm1538 = vmor %vm1536, %vm1537
    %v1539 = vsel %vm1538, %v1531, %v1535
    %v1540 = vand.u32 2147483647, %v1530
    %vm1541 = vcmp.eq.f32.partialorder %v1540, 8.507059e+37
    %v1542 = vand.u32 %v1530, 2147483648
    %v1543 = vor.u32 1.1754944e-38, %v1542
    %v1544 = vsel %vm1541, %v1543, %v1539
    %v1545 = vmul.f32 1.0, %v1544
    %v1546 = vadd.f32 %v172, %v1510
    %v1547 = vxor.u32 %v1546, 2147483648
    %v1548 = vmul.f32 %v1547, 1.442695
    %v1549 = vpow.pop %v1548
    %v1550 = vadd.f32 %v1549, 1.0
    %v1551 = vrcp.pop %v1550
    %v1552 = vmul.f32 %v1550, %v1551
    %v1553 = vsub.f32 1.0, %v1552
    %v1554 = vmul.f32 %v1551, %v1553
    %v1555 = vadd.f32 %v1551, %v1554
    %vm1556 = vweird.f32 %v1550
    %vm1557 = vweird.f32 %v1551
    %vm1558 = vmor %vm1556, %vm1557
    %v1559 = vsel %vm1558, %v1551, %v1555
    %v1560 = vand.u32 2147483647, %v1550
    %vm1561 = vcmp.eq.f32.partialorder %v1560, 8.507059e+37
    %v1562 = vand.u32 %v1550, 2147483648
    %v1563 = vor.u32 1.1754944e-38, %v1562
    %v1564 = vsel %vm1561, %v1563, %v1559
    %v1565 = vmul.f32 1.0, %v1564
    %v1566 = vadd.f32 %v1523, %v203
    %v1567 = vmul.f32 %v1545, %v1566
    %v1568 = vadd.f32 %v201, %v1567
    %v1569 = vtanh.pop %v1568
    %v1570 = vsub.f32 1.0, %v1565
    %v1571 = vmul.f32 %v1570, %v1569
    %v1573 = vrot.slane %v1479, 6
    %v1575 = vmul.f32 %v1565, %v1573
    %v1576 = vadd.f32 %v1571, %v1575
    %1577 = vst.msk [vmem:[#allocation2 + $0x18] sm:$0x3] %vm334, %v1576
    %v1578 = vpack.c.bf16 %v1576, %v1576
    %v1580 = vsel %vm234, %v1578, 0
    %1582 = vmatpush.bf16.msra.mxu0 0
    %1583 = vmatpush.bf16.msra.mxu0 0
    %1584 = vmatpush.bf16.msra.mxu0 0
    %1585 = vmatpush.bf16.msra.mxu0 0
    %1586 = vmatpush.bf16.msra.mxu0 0
    %1587 = vmatpush.bf16.msra.mxu0 0
    %1588 = vmatpush.bf16.msra.mxu0 %v239
    %1589 = vmatpush.bf16.msra.mxu0 %v225
    %1590 = vmatmul.bf16.gmra.mxu0 %v1580
    %v1591 = vpop.f32.mrf.mxu0
    %v1592 = vadd.f32 0.0, %v1591
    %v1593 = vpop.f32.mrf.mxu0
    %1594 = vdwg.mxu0
    %1595 = vmatpush.bf16.msra.mxu0 0
    %1596 = vmatpush.bf16.msra.mxu0 0
    %1597 = vmatpush.bf16.msra.mxu0 0
    %1598 = vmatpush.bf16.msra.mxu0 0
    %1599 = vmatpush.bf16.msra.mxu0 0
    %1600 = vmatpush.bf16.msra.mxu0 0
    %1601 = vmatpush.bf16.msra.mxu0 %v242
    %1602 = vmatpush.bf16.msra.mxu0 %v226
    %1603 = vmatmul.bf16.gmra.mxu0 %v1580
    %v1604 = vpop.f32.mrf.mxu0
    %v1605 = vadd.f32 0.0, %v1604
    %v1606 = vpop.f32.mrf.mxu0
    %1607 = vdwg.mxu0
    %1608 = vmatpush.bf16.msra.mxu0 0
    %1609 = vmatpush.bf16.msra.mxu0 0
    %1610 = vmatpush.bf16.msra.mxu0 0
    %1611 = vmatpush.bf16.msra.mxu0 0
    %1612 = vmatpush.bf16.msra.mxu0 0
    %1613 = vmatpush.bf16.msra.mxu0 0
    %1614 = vmatpush.bf16.msra.mxu0 %v245
    %1615 = vmatpush.bf16.msra.mxu0 %v227
    %1616 = vmatmul.bf16.gmra.mxu0 %v1580
    %v1617 = vpop.f32.mrf.mxu0
    %v1618 = vadd.f32 0.0, %v1617
    %v1619 = vpop.f32.mrf.mxu0
    %1620 = vdwg.mxu0
    %v1622 = vrot.slane %v1592, 6
    %v1624 = vadd.f32 %v143, %v1622
    %v1625 = vxor.u32 %v1624, 2147483648
    %v1626 = vmul.f32 %v1625, 1.442695
    %v1627 = vpow.pop %v1626
    %v1628 = vadd.f32 %v1627, 1.0
    %v1629 = vrcp.pop %v1628
    %v1630 = vmul.f32 %v1628, %v1629
    %v1631 = vsub.f32 1.0, %v1630
    %v1632 = vmul.f32 %v1629, %v1631
    %v1633 = vadd.f32 %v1629, %v1632
    %vm1634 = vweird.f32 %v1628
    %vm1635 = vweird.f32 %v1629
    %vm1636 = vmor %vm1634, %vm1635
    %v1637 = vsel %vm1636, %v1629, %v1633
    %v1638 = vand.u32 2147483647, %v1628
    %vm1639 = vcmp.eq.f32.partialorder %v1638, 8.507059e+37
    %v1640 = vand.u32 %v1628, 2147483648
    %v1641 = vor.u32 1.1754944e-38, %v1640
    %v1642 = vsel %vm1639, %v1641, %v1637
    %v1643 = vmul.f32 1.0, %v1642
    %v1645 = vrot.slane %v1605, 6
    %v1647 = vadd.f32 %v172, %v1645
    %v1648 = vxor.u32 %v1647, 2147483648
    %v1649 = vmul.f32 %v1648, 1.442695
    %v1650 = vpow.pop %v1649
    %v1651 = vadd.f32 %v1650, 1.0
    %v1652 = vrcp.pop %v1651
    %v1653 = vmul.f32 %v1651, %v1652
    %v1654 = vsub.f32 1.0, %v1653
    %v1655 = vmul.f32 %v1652, %v1654
    %v1656 = vadd.f32 %v1652, %v1655
    %vm1657 = vweird.f32 %v1651
    %vm1658 = vweird.f32 %v1652
    %vm1659 = vmor %vm1657, %vm1658
    %v1660 = vsel %vm1659, %v1652, %v1656
    %v1661 = vand.u32 2147483647, %v1651
    %vm1662 = vcmp.eq.f32.partialorder %v1661, 8.507059e+37
    %v1663 = vand.u32 %v1651, 2147483648
    %v1664 = vor.u32 1.1754944e-38, %v1663
    %v1665 = vsel %vm1662, %v1664, %v1660
    %v1666 = vmul.f32 1.0, %v1665
    %v1667 = vadd.f32 %v1618, %v203
    %v1669 = vrot.slane %v1667, 6
    %v1671 = vmul.f32 %v1643, %v1669
    %v1672 = vadd.f32 %v201, %v1671
    %v1673 = vtanh.pop %v1672
    %v1674 = vsub.f32 1.0, %v1666
    %v1675 = vmul.f32 %v1674, %v1673
    %v1677 = vrot.slane %v1576, 6
    %v1679 = vmul.f32 %v1666, %v1677
    %v1680 = vadd.f32 %v1675, %v1679
    %1681 = vst.msk [vmem:[#allocation2 + $0x18] sm:$0xc] %vm439, %v1680
    %v1682 = vpack.c.bf16 %v1680, %v1680
    %v1684 = vrot.slane %v1682, 1
    %v1686 = vsel %vm234, %v1684, 0
    %1688 = vmatpush.bf16.msra.mxu0 0
    %1689 = vmatpush.bf16.msra.mxu0 0
    %1690 = vmatpush.bf16.msra.mxu0 0
    %1691 = vmatpush.bf16.msra.mxu0 0
    %1692 = vmatpush.bf16.msra.mxu0 0
    %1693 = vmatpush.bf16.msra.mxu0 0
    %1694 = vmatpush.bf16.msra.mxu0 %v239
    %1695 = vmatpush.bf16.msra.mxu0 %v225
    %1696 = vmatmul.bf16.gmra.mxu0 %v1686
    %v1697 = vpop.f32.mrf.mxu0
    %v1698 = vadd.f32 0.0, %v1697
    %v1699 = vpop.f32.mrf.mxu0
    %1700 = vdwg.mxu0
    %1701 = vmatpush.bf16.msra.mxu0 0
    %1702 = vmatpush.bf16.msra.mxu0 0
    %1703 = vmatpush.bf16.msra.mxu0 0
    %1704 = vmatpush.bf16.msra.mxu0 0
    %1705 = vmatpush.bf16.msra.mxu0 0
    %1706 = vmatpush.bf16.msra.mxu0 0
    %1707 = vmatpush.bf16.msra.mxu0 %v242
    %1708 = vmatpush.bf16.msra.mxu0 %v226
    %1709 = vmatmul.bf16.gmra.mxu0 %v1686
    %v1710 = vpop.f32.mrf.mxu0
    %v1711 = vadd.f32 0.0, %v1710
    %v1712 = vpop.f32.mrf.mxu0
    %1713 = vdwg.mxu0
    %1714 = vmatpush.bf16.msra.mxu0 0
    %1715 = vmatpush.bf16.msra.mxu0 0
    %1716 = vmatpush.bf16.msra.mxu0 0
    %1717 = vmatpush.bf16.msra.mxu0 0
    %1718 = vmatpush.bf16.msra.mxu0 0
    %1719 = vmatpush.bf16.msra.mxu0 0
    %1720 = vmatpush.bf16.msra.mxu0 %v245
    %1721 = vmatpush.bf16.msra.mxu0 %v227
    %1722 = vmatmul.bf16.gmra.mxu0 %v1686
    %v1723 = vpop.f32.mrf.mxu0
    %v1724 = vadd.f32 0.0, %v1723
    %v1725 = vpop.f32.mrf.mxu0
    %1726 = vdwg.mxu0
    %v1728 = vrot.slane %v1698, 4
    %v1730 = vadd.f32 %v143, %v1728
    %v1731 = vxor.u32 %v1730, 2147483648
    %v1732 = vmul.f32 %v1731, 1.442695
    %v1733 = vpow.pop %v1732
    %v1734 = vadd.f32 %v1733, 1.0
    %v1735 = vrcp.pop %v1734
    %v1736 = vmul.f32 %v1734, %v1735
    %v1737 = vsub.f32 1.0, %v1736
    %v1738 = vmul.f32 %v1735, %v1737
    %v1739 = vadd.f32 %v1735, %v1738
    %vm1740 = vweird.f32 %v1734
    %vm1741 = vweird.f32 %v1735
    %vm1742 = vmor %vm1740, %vm1741
    %v1743 = vsel %vm1742, %v1735, %v1739
    %v1744 = vand.u32 2147483647, %v1734
    %vm1745 = vcmp.eq.f32.partialorder %v1744, 8.507059e+37
    %v1746 = vand.u32 %v1734, 2147483648
    %v1747 = vor.u32 1.1754944e-38, %v1746
    %v1748 = vsel %vm1745, %v1747, %v1743
    %v1749 = vmul.f32 1.0, %v1748
    %v1751 = vrot.slane %v1711, 4
    %v1753 = vadd.f32 %v172, %v1751
    %v1754 = vxor.u32 %v1753, 2147483648
    %v1755 = vmul.f32 %v1754, 1.442695
    %v1756 = vpow.pop %v1755
    %v1757 = vadd.f32 %v1756, 1.0
    %v1758 = vrcp.pop %v1757
    %v1759 = vmul.f32 %v1757, %v1758
    %v1760 = vsub.f32 1.0, %v1759
    %v1761 = vmul.f32 %v1758, %v1760
    %v1762 = vadd.f32 %v1758, %v1761
    %vm1763 = vweird.f32 %v1757
    %vm1764 = vweird.f32 %v1758
    %vm1765 = vmor %vm1763, %vm1764
    %v1766 = vsel %vm1765, %v1758, %v1762
    %v1767 = vand.u32 2147483647, %v1757
    %vm1768 = vcmp.eq.f32.partialorder %v1767, 8.507059e+37
    %v1769 = vand.u32 %v1757, 2147483648
    %v1770 = vor.u32 1.1754944e-38, %v1769
    %v1771 = vsel %vm1768, %v1770, %v1766
    %v1772 = vmul.f32 1.0, %v1771
    %v1773 = vadd.f32 %v1724, %v203
    %v1775 = vrot.slane %v1773, 4
    %v1777 = vmul.f32 %v1749, %v1775
    %v1778 = vadd.f32 %v201, %v1777
    %v1779 = vtanh.pop %v1778
    %v1780 = vsub.f32 1.0, %v1772
    %v1781 = vmul.f32 %v1780, %v1779
    %v1783 = vrot.slane %v1680, 6
    %v1785 = vmul.f32 %v1772, %v1783
    %v1786 = vadd.f32 %v1781, %v1785
    %1787 = vst.msk [vmem:[#allocation2 + $0x18] sm:$0x30] %vm546, %v1786
    %v1788 = vpack.c.bf16 %v1786, %v1786
    %v1790 = vrot.slane %v1788, 2
    %v1792 = vsel %vm234, %v1790, 0
    %1794 = vmatpush.bf16.msra.mxu0 0
    %1795 = vmatpush.bf16.msra.mxu0 0
    %1796 = vmatpush.bf16.msra.mxu0 0
    %1797 = vmatpush.bf16.msra.mxu0 0
    %1798 = vmatpush.bf16.msra.mxu0 0
    %1799 = vmatpush.bf16.msra.mxu0 0
    %1800 = vmatpush.bf16.msra.mxu0 %v239
    %1801 = vmatpush.bf16.msra.mxu0 %v225
    %1802 = vmatmul.bf16.gmra.mxu0 %v1792
    %v1803 = vpop.f32.mrf.mxu0
    %v1804 = vadd.f32 0.0, %v1803
    %v1805 = vpop.f32.mrf.mxu0
    %1806 = vdwg.mxu0
    %1807 = vmatpush.bf16.msra.mxu0 0
    %1808 = vmatpush.bf16.msra.mxu0 0
    %1809 = vmatpush.bf16.msra.mxu0 0
    %1810 = vmatpush.bf16.msra.mxu0 0
    %1811 = vmatpush.bf16.msra.mxu0 0
    %1812 = vmatpush.bf16.msra.mxu0 0
    %1813 = vmatpush.bf16.msra.mxu0 %v242
    %1814 = vmatpush.bf16.msra.mxu0 %v226
    %1815 = vmatmul.bf16.gmra.mxu0 %v1792
    %v1816 = vpop.f32.mrf.mxu0
    %v1817 = vadd.f32 0.0, %v1816
    %v1818 = vpop.f32.mrf.mxu0
    %1819 = vdwg.mxu0
    %1820 = vmatpush.bf16.msra.mxu0 0
    %1821 = vmatpush.bf16.msra.mxu0 0
    %1822 = vmatpush.bf16.msra.mxu0 0
    %1823 = vmatpush.bf16.msra.mxu0 0
    %1824 = vmatpush.bf16.msra.mxu0 0
    %1825 = vmatpush.bf16.msra.mxu0 0
    %1826 = vmatpush.bf16.msra.mxu0 %v245
    %1827 = vmatpush.bf16.msra.mxu0 %v227
    %1828 = vmatmul.bf16.gmra.mxu0 %v1792
    %v1829 = vpop.f32.mrf.mxu0
    %v1830 = vadd.f32 0.0, %v1829
    %v1831 = vpop.f32.mrf.mxu0
    %1832 = vdwg.mxu0
    %v1834 = vrot.slane %v1804, 2
    %v1836 = vadd.f32 %v143, %v1834
    %v1837 = vxor.u32 %v1836, 2147483648
    %v1838 = vmul.f32 %v1837, 1.442695
    %v1839 = vpow.pop %v1838
    %v1840 = vadd.f32 %v1839, 1.0
    %v1841 = vrcp.pop %v1840
    %v1842 = vmul.f32 %v1840, %v1841
    %v1843 = vsub.f32 1.0, %v1842
    %v1844 = vmul.f32 %v1841, %v1843
    %v1845 = vadd.f32 %v1841, %v1844
    %vm1846 = vweird.f32 %v1840
    %vm1847 = vweird.f32 %v1841
    %vm1848 = vmor %vm1846, %vm1847
    %v1849 = vsel %vm1848, %v1841, %v1845
    %v1850 = vand.u32 2147483647, %v1840
    %vm1851 = vcmp.eq.f32.partialorder %v1850, 8.507059e+37
    %v1852 = vand.u32 %v1840, 2147483648
    %v1853 = vor.u32 1.1754944e-38, %v1852
    %v1854 = vsel %vm1851, %v1853, %v1849
    %v1855 = vmul.f32 1.0, %v1854
    %v1857 = vrot.slane %v1817, 2
    %v1859 = vadd.f32 %v172, %v1857
    %v1860 = vxor.u32 %v1859, 2147483648
    %v1861 = vmul.f32 %v1860, 1.442695
    %v1862 = vpow.pop %v1861
    %v1863 = vadd.f32 %v1862, 1.0
    %v1864 = vrcp.pop %v1863
    %v1865 = vmul.f32 %v1863, %v1864
    %v1866 = vsub.f32 1.0, %v1865
    %v1867 = vmul.f32 %v1864, %v1866
    %v1868 = vadd.f32 %v1864, %v1867
    %vm1869 = vweird.f32 %v1863
    %vm1870 = vweird.f32 %v1864
    %vm1871 = vmor %vm1869, %vm1870
    %v1872 = vsel %vm1871, %v1864, %v1868
    %v1873 = vand.u32 2147483647, %v1863
    %vm1874 = vcmp.eq.f32.partialorder %v1873, 8.507059e+37
    %v1875 = vand.u32 %v1863, 2147483648
    %v1876 = vor.u32 1.1754944e-38, %v1875
    %v1877 = vsel %vm1874, %v1876, %v1872
    %v1878 = vmul.f32 1.0, %v1877
    %v1879 = vadd.f32 %v1830, %v203
    %v1881 = vrot.slane %v1879, 2
    %v1883 = vmul.f32 %v1855, %v1881
    %v1884 = vadd.f32 %v201, %v1883
    %v1885 = vtanh.pop %v1884
    %v1886 = vsub.f32 1.0, %v1878
    %v1887 = vmul.f32 %v1886, %v1885
    %v1889 = vrot.slane %v1786, 6
    %v1891 = vmul.f32 %v1878, %v1889
    %v1892 = vadd.f32 %v1887, %v1891
    %1893 = vst.msk [vmem:[#allocation2 + $0x18] sm:$0xc0] %vm653, %v1892
    %v1894 = vld [vmem:[#allocation2] sm:$0xff]
    %v1895 = vld [vmem:[#allocation2 + $0x8] sm:$0xff]
    %v1896 = vld [vmem:[#allocation2 + $0x10] sm:$0xff]
    %v1897 = vld [vmem:[#allocation2 + $0x18] sm:$0xff]
    %v1898 = vld [vmem:[#allocation3 + $0x78] sm:$0xff]
    %v1899 = vld [vmem:[#allocation3 + $0x90] sm:$0xff]
    %v1900 = vld [vmem:[#allocation3 + $0xa8] sm:$0xff]
    %v1901 = vld [vmem:[#allocation3 + $0x62] ss:$0 sm:$0xff]
    %v1903 = vsel %vm234, %v1894, 0
    %v1906 = vsel %vm234, %v1895, 0
    %v1909 = vsel %vm234, %v1896, 0
    %v1912 = vsel %vm234, %v1897, 0
    %1914 = vmatpush.msra.mxu0 0.0
    %1915 = vmatpush.msra.mxu0 0.0
    %1916 = vmatpush.msra.mxu0 0.0
    %1917 = vmatpush.msra.mxu0 0.0
    %1918 = vmatpush.msra.mxu0 0.0
    %1919 = vmatpush.msra.mxu0 0.0
    %1920 = vmatpush.msra.mxu0 0.0
    %1921 = vmatpush.msra.mxu0 0.0
    %1922 = vmatpush.msra.mxu0 0.0
    %1923 = vmatpush.msra.mxu0 0.0
    %1924 = vmatpush.msra.mxu0 0.0
    %1925 = vmatpush.msra.mxu0 0.0
    %1926 = vmatpush.msra.mxu0 0.0
    %1927 = vmatpush.msra.mxu0 %v1900
    %1928 = vmatpush.msra.mxu0 %v1899
    %1929 = vmatpush.msra.mxu0 %v1898
    %1930 = vmatmul.f32.gmra.mxu0 %v1903
    %v1931 = vpop.f32.mrf.mxu0
    %v1932 = vadd.f32 %v1901, %v1931
    %1933 = vmatmul.f32.gmra.mxu0 %v1906
    %v1934 = vpop.f32.mrf.mxu0
    %v1935 = vadd.f32 %v1901, %v1934
    %1936 = vmatmul.f32.gmra.mxu0 %v1909
    %v1937 = vpop.f32.mrf.mxu0
    %v1938 = vadd.f32 %v1901, %v1937
    %1939 = vmatmul.f32.gmra.mxu0 %v1912
    %v1940 = vpop.f32.mrf.mxu0
    %v1941 = vadd.f32 %v1901, %v1940
    %1942 = vdwg.mxu0
    %v1943 = vmax.f32 %v1932, 0.0
    %v1944 = vmax.f32 %v1935, 0.0
    %v1945 = vmax.f32 %v1938, 0.0
    %v1946 = vmax.f32 %v1941, 0.0
    %1947 = vst [vmem:[%s3] sm:$0xff] %v1943
    %1948 = vst [vmem:[%s3 + $0x8] sm:$0xff] %v1944
    %1949 = vst [vmem:[%s3 + $0x10] sm:$0xff] %v1945
    %1950 = vst [vmem:[%s3 + $0x18] sm:$0xff] %v1946
    // Predicated region
    $region18: #{forward.1} parent=1 // pred_check
      _
    $region19: #{forward.1} parent=1 // pred_check_branch
      %1952 = sbr.rel (0) target = $region21
    $region20: #{forward.1} parent=1 // pred_region
      _
    $region21: #{forward.1} parent=1 // pred_fallthru
      _
    // Predicated region
    $region22: #{forward.1} parent=1 // pred_check
      _
    $region23: #{forward.1} parent=1 // pred_check_branch
      %1954 = sbr.rel (0) target = $region25
    $region24: #{forward.1} parent=1 // pred_region
      _
    $region25: #{forward.1} parent=1 // pred_fallthru
      _
    %1955 = vsyncpa [#allocation4], 1

</llo_original>
